<compile_context>
chip_gen: v5e
topology: v5e:2x2
jax: 0.10.0
libtpu: 0.0.40
codegen_flags: <defaults>
</compile_context>

<pallas_src>
import numpy as np
import jax
import jax.numpy as jnp
from jax.experimental import pallas as pl
from jax.experimental.pallas import tpu as pltpu

# ----------------------------- module-consistent sizes -----------------------
IMAGE_SIZE   = 8
HIDDEN_SIZE  = 16                    # divisible by 4 (Ted_Conv2d splits 4 ways)
C4           = HIDDEN_SIZE // 4
ENCODE_RGBD  = 16
COMM_SHAPE   = 8                     # comm vocab
ENCODE_SIZE  = 8                     # comm embedding dim
MAX_COMM_LEN = 5
ENCODE_COMM  = 16
OTHER_SHAPE  = 8
ENCODE_OTHER = 8
OBS_SIZE     = ENCODE_RGBD + ENCODE_COMM + ENCODE_OTHER   # 40
EPS          = 1e-5

RGBD_FLAT    = IMAGE_SIZE * IMAGE_SIZE * 4                 # 256  (HWC flatten)
CONV_FLAT    = IMAGE_SIZE * IMAGE_SIZE * HIDDEN_SIZE       # 1024 (HWC flatten)

VW = 3 * HIDDEN_SIZE                 # packed-vector width (48, widest = GRU bias)
# rows of the packed "vecs" VMEM array (all BatchNorms already folded in)
R_RLIN_B, R_GRU_BHH, R_BN1_S, R_BN1_B, R_CLIN_B, R_OTH_B = 0, 1, 2, 3, 4, 5
N_VEC_ROWS = 8
# slots of the SMEM "alphas" array (PReLU slopes that survive the folding)
A_CONV, A_RLIN, A_CLIN, A_BN2, A_OTH = 0, 1, 2, 3, 4


# --------------------------------- the kernel --------------------------------
def obs_in_kernel(rgbd_ref, comm_ref, other_ref, alphas_ref, vecs_ref,
                  wconv_ref, cbias_ref, wrlin_ref, gtbl_ref, whh_ref,
                  wclin_ref, woth_ref, o_ref):
    HS = HIDDEN_SIZE
    tb = rgbd_ref.shape[0]

    def vrow(i, w):
        return vecs_ref[i:i + 1, 0:w]                       # (1, w) VMEM vector

    def prelu(x, a):
        return jnp.where(x >= 0.0, x, a * x)

    # ---------------- RGBD_IN: Toeplitz conv matmul + head matmul ----------------
    # (x*2-1), BatchNorm2d(4), Ted_Conv2d, conv bias and BatchNorm2d(16) are all
    # folded into wconv/cbias; inputs & weight are bf16, accumulation is f32.
    y = jnp.dot(rgbd_ref[...], wconv_ref[...],
                preferred_element_type=jnp.float32)          # (tb, 1024)
    y = y + cbias_ref[...]
    y = prelu(y, alphas_ref[A_CONV])
    r = jnp.dot(y, wrlin_ref[...], preferred_element_type=jnp.float32)
    r = r + vrow(R_RLIN_B, ENCODE_RGBD)                      # BN1d already folded
    rgbd_enc = prelu(r, alphas_ref[A_RLIN])                  # (tb, 16)

    # ---------------- Comm_IN: (8,48) table lookup + GRU -------------------------
    # embedding -> PReLU -> BN -> Conv1d(k=1) -> BN -> PReLU -> (@ w_ih + b_ih) is
    # precomputed as gtbl; the one-hot matmul computes GI for all 5 steps at once.
    oh = comm_ref[...].reshape(MAX_COMM_LEN * tb, COMM_SHAPE)
    gi_all = jnp.dot(oh, gtbl_ref[...],
                     preferred_element_type=jnp.float32)     # (5*tb, 48), t-major
    b_hh = vrow(R_GRU_BHH, 3 * HS)
    h = jnp.zeros((tb, HS), jnp.float32)
    for t in range(MAX_COMM_LEN):                            # GRU, h0 = 0
        gi = gi_all[t * tb:(t + 1) * tb, :]
        gh = jnp.dot(h, whh_ref[...], preferred_element_type=jnp.float32) + b_hh
        rg = jax.nn.sigmoid(gi[:, 0:HS] + gh[:, 0:HS])
        zg = jax.nn.sigmoid(gi[:, HS:2 * HS] + gh[:, HS:2 * HS])
        ng = jnp.tanh(gi[:, 2 * HS:3 * HS] + rg * gh[:, 2 * HS:3 * HS])
        h = (1.0 - zg) * ng + zg * h
    h = h * vrow(R_BN1_S, HS) + vrow(R_BN1_B, HS)            # batchnorm_1, eval
    h = prelu(h, alphas_ref[A_CLIN])                         # comm_lin PReLU
    cm = jnp.dot(h, wclin_ref[...], preferred_element_type=jnp.float32)
    cm = cm + vrow(R_CLIN_B, ENCODE_COMM)                    # batchnorm_2 folded
    comm_enc = prelu(cm, alphas_ref[A_BN2])                  # (tb, 16)

    # ---------------- Other_IN ----------------------------------------------------
    o = jnp.dot(other_ref[...], woth_ref[...], preferred_element_type=jnp.float32)
    o = o + vrow(R_OTH_B, ENCODE_OTHER)                      # BN folded
    other_enc = prelu(o, alphas_ref[A_OTH])                  # (tb, 8)

    # ---------------- concat -> direct slice stores -------------------------------
    o_ref[:, 0:ENCODE_RGBD] = rgbd_enc
    o_ref[:, ENCODE_RGBD:ENCODE_RGBD + ENCODE_COMM] = comm_enc
    o_ref[:, ENCODE_RGBD + ENCODE_COMM:OBS_SIZE] = other_enc


# ------------------------------- the wrapper ----------------------------------
def obs_in_forward(rgbd, comm, other, kp):
    # torch-style unsqueeze handling
    if rgbd.ndim == 4:
        rgbd = rgbd[:, None]
    if comm.ndim == 2:
        comm = comm[None]
    if comm.ndim == 3:
        comm = comm[:, None]
    if other.ndim == 2:
        other = other[:, None]

    episodes, steps = rgbd.shape[0], rgbd.shape[1]
    B = episodes * steps

    # HWC-flattened rgbd, cast to bf16 for the Toeplitz MXU matmul (f32 accumulate)
    rgbd = rgbd.reshape(B, RGBD_FLAT).astype(jnp.bfloat16)
    other = other.reshape(B, OTHER_SHAPE).astype(jnp.float32)
    comm = comm.reshape(B, comm.shape[2], comm.shape[3]).astype(jnp.float32)

    # pad_zeros -> argmax -> one-hot tokens (table lookup becomes a small matmul)
    pad_len = MAX_COMM_LEN - comm.shape[1]
    if pad_len > 0:
        comm = jnp.pad(comm, ((0, 0), (0, pad_len), (0, 0)))
    tokens = jnp.argmax(comm, axis=-1)
    comm_oh = jax.nn.one_hot(tokens, COMM_SHAPE, dtype=jnp.float32)   # (B, L, V)
    comm_oh = jnp.transpose(comm_oh, (1, 0, 2))                       # (L, B, V)

    # batch tile: 128 for real batches (MXU M-fill, grid>=2 so both v7x cores work),
    # minimal 8-row multiple for tiny batches to avoid useless padding.
    if B >= 256:
        TB = 128
    else:
        TB = min(128, ((B + 7) // 8) * 8)
    Bp = ((B + TB - 1) // TB) * TB
    if Bp != B:
        rgbd = jnp.pad(rgbd, ((0, Bp - B), (0, 0)))
        other = jnp.pad(other, ((0, Bp - B), (0, 0)))
        comm_oh = jnp.pad(comm_oh, ((0, 0), (0, Bp - B), (0, 0)))

    def full(shape):
        nd = len(shape)
        return pl.BlockSpec(shape, lambda n, _nd=nd: (0,) * _nd)

    out = pl.pallas_call(
        obs_in_kernel,
        out_shape=jax.ShapeDtypeStruct((Bp, OBS_SIZE), jnp.float32),
        grid_spec=pltpu.PrefetchScalarGridSpec(
            num_scalar_prefetch=0,
            grid=(Bp // TB,),
            in_specs=[
                pl.BlockSpec((TB, RGBD_FLAT), lambda n: (n, 0)),
                pl.BlockSpec((MAX_COMM_LEN, TB, COMM_SHAPE), lambda n: (0, n, 0)),
                pl.BlockSpec((TB, OTHER_SHAPE), lambda n: (n, 0)),
                pl.BlockSpec(memory_space=pltpu.MemorySpace.SMEM),   # PReLU alphas
                full((N_VEC_ROWS, VW)),
                full((RGBD_FLAT, CONV_FLAT)),
                full((1, CONV_FLAT)),
                full((CONV_FLAT, ENCODE_RGBD)),
                full((COMM_SHAPE, 3 * HIDDEN_SIZE)),
                full((HIDDEN_SIZE, 3 * HIDDEN_SIZE)),
                full((HIDDEN_SIZE, ENCODE_COMM)),
                full((OTHER_SHAPE, ENCODE_OTHER)),
            ],
            out_specs=pl.BlockSpec((TB, OBS_SIZE), lambda n: (n, 0)),
        ),
        compiler_params=pltpu.CompilerParams(
            dimension_semantics=("parallel",),
            vmem_limit_bytes=32 * 1024 * 1024),
    )(rgbd, comm_oh, other, kp["alphas"], kp["vecs"], kp["w_conv"], kp["conv_bias"],
      kp["w_rgbd_lin"], kp["gi_tbl"], kp["w_hh"], kp["w_clin"], kp["w_other"])

    return out[:B].reshape(episodes, steps, OBS_SIZE)


# ----------------------------- parameters & prep ------------------------------
def bn_affine(gamma, beta):
    # eval mode with running_mean = 0, running_var = 1
    return gamma / jnp.sqrt(1.0 + EPS), beta


def bn_affine_np(gamma, beta):
    g = np.asarray(gamma, np.float64)
    b = np.asarray(beta, np.float64)
    return g / np.sqrt(1.0 + EPS), b


def init_params(key):
    ks = jax.random.split(key, 40)
    s = 0.05

    def nrm(i, shape):
        return s * jax.random.normal(ks[i], shape, jnp.float32)

    def gamma(i, n):
        return 1.0 + 0.1 * jax.random.normal(ks[i], (n,), jnp.float32)

    def beta(i, n):
        return 0.1 * jax.random.normal(ks[i], (n,), jnp.float32)

    p = {}
    # RGBD_IN
    p["bn0_gamma"], p["bn0_beta"] = gamma(0, 4), beta(1, 4)
    p["w1"], p["b1"] = nrm(2, (1, 1, 4, C4)), nrm(3, (C4,))
    p["w3a"], p["b3a"] = nrm(4, (3, 3, 4, C4)), nrm(5, (C4,))
    p["w3b"], p["b3b"] = nrm(6, (3, 3, 4, C4)), nrm(7, (C4,))
    p["w5"], p["b5"] = nrm(8, (5, 5, 4, C4)), nrm(9, (C4,))
    p["conv_bn_gamma"], p["conv_bn_beta"] = gamma(10, HIDDEN_SIZE), beta(11, HIDDEN_SIZE)
    p["conv_alpha"] = jnp.float32(0.25)
    # NOTE: HWC-flattened row order (a torch checkpoint's (E, C*H*W) weight would
    # need its rows permuted from CHW to HWC order once at load time).
    p["w_rgbd_lin"] = nrm(12, (CONV_FLAT, ENCODE_RGBD))
    p["b_rgbd_lin"] = nrm(13, (ENCODE_RGBD,))
    p["rlin_bn_gamma"], p["rlin_bn_beta"] = gamma(14, ENCODE_RGBD), beta(15, ENCODE_RGBD)
    p["rlin_alpha"] = jnp.float32(0.25)
    # Comm_IN
    p["emb"] = nrm(16, (COMM_SHAPE, ENCODE_SIZE))
    p["emb_alpha"] = jnp.float32(0.25)
    p["bna_gamma"], p["bna_beta"] = gamma(17, ENCODE_SIZE), beta(18, ENCODE_SIZE)
    p["w_c1d"], p["b_c1d"] = nrm(19, (ENCODE_SIZE, HIDDEN_SIZE)), nrm(20, (HIDDEN_SIZE,))
    p["bnb_gamma"], p["bnb_beta"] = gamma(21, HIDDEN_SIZE), beta(22, HIDDEN_SIZE)
    p["cnn_alpha"] = jnp.float32(0.25)
    p["w_ih"] = nrm(23, (HIDDEN_SIZE, 3 * HIDDEN_SIZE))
    p["w_hh"] = nrm(24, (HIDDEN_SIZE, 3 * HIDDEN_SIZE))
    p["b_ih"] = nrm(25, (3 * HIDDEN_SIZE,))
    p["b_hh"] = nrm(26, (3 * HIDDEN_SIZE,))
    p["bn1_gamma"], p["bn1_beta"] = gamma(27, HIDDEN_SIZE), beta(28, HIDDEN_SIZE)
    p["clin_alpha"] = jnp.float32(0.25)
    p["w_clin"], p["b_clin"] = nrm(29, (HIDDEN_SIZE, ENCODE_COMM)), nrm(30, (ENCODE_COMM,))
    p["bn2_gamma"], p["bn2_beta"] = gamma(31, ENCODE_COMM), beta(32, ENCODE_COMM)
    p["bn2_alpha"] = jnp.float32(0.25)
    # Other_IN
    p["w_other"], p["b_other"] = nrm(33, (OTHER_SHAPE, ENCODE_OTHER)), nrm(34, (ENCODE_OTHER,))
    p["oth_bn_gamma"], p["oth_bn_beta"] = gamma(35, ENCODE_OTHER), beta(36, ENCODE_OTHER)
    p["oth_alpha"] = jnp.float32(0.25)
    return p


def prep_kernel_params(p):
    H = W = IMAGE_SIZE
    HS = HIDDEN_SIZE

    def npf(x):
        return np.asarray(x, np.float64)

    def prelu_np(x, a):
        return np.where(x >= 0.0, x, a * x)

    # ---- combined 5x5 Ted_Conv2d weight (1x1 / 3x3 / 3x3 / 5x5 zero-embedded) ----
    wc = np.zeros((5, 5, 4, HS), np.float64)
    wc[2:3, 2:3, :, 0:C4] = npf(p["w1"])
    wc[1:4, 1:4, :, C4:2 * C4] = npf(p["w3a"])
    wc[1:4, 1:4, :, 2 * C4:3 * C4] = npf(p["w3b"])
    wc[:, :, :, 3 * C4:] = npf(p["w5"])
    conv_b = np.concatenate([npf(p["b1"]), npf(p["b3a"]), npf(p["b3b"]), npf(p["b5"])])

    # ---- block-Toeplitz matrix of the zero-padded 5x5 conv, HWC flatten order ----
    T = np.zeros((H * W * 4, H * W * HS), np.float64)
    for oy in range(H):
        for ox in range(W):
            c0 = (oy * W + ox) * HS
            for dy in range(5):
                iy = oy + dy - 2
                if not (0 <= iy < H):
                    continue
                for dx in range(5):
                    ix = ox + dx - 2
                    if not (0 <= ix < W):
                        continue
                    r0 = (iy * W + ix) * 4
                    T[r0:r0 + 4, c0:c0 + HS] = wc[dy, dx]

    # fold (x*2-1), BatchNorm2d(4), conv bias and BatchNorm2d(16) into T / its bias
    s0, b0 = bn_affine_np(p["bn0_gamma"], p["bn0_beta"])
    a_row = np.tile(2.0 * s0, H * W)                     # (256,) per input channel
    d_row = np.tile(b0 - s0, H * W)
    cs, cb = bn_affine_np(p["conv_bn_gamma"], p["conv_bn_beta"])
    cs_col = np.tile(cs, H * W)                          # (1024,) channel-fastest
    cb_col = np.tile(cb, H * W)
    bias_col = np.tile(conv_b, H * W)
    w_conv = (a_row[:, None] * T) * cs_col[None, :]
    conv_bias = (d_row @ T + bias_col) * cs_col + cb_col

    # rgbd_in_lin with its BatchNorm1d folded in
    rs, rb = bn_affine_np(p["rlin_bn_gamma"], p["rlin_bn_beta"])
    w_rlin = npf(p["w_rgbd_lin"]) * rs[None, :]
    b_rlin = npf(p["b_rgbd_lin"]) * rs + rb

    # ---- comm front-end folded into an (8,48) GI lookup table -------------------
    asn, abt = bn_affine_np(p["bna_gamma"], p["bna_beta"])
    bs, bb = bn_affine_np(p["bnb_gamma"], p["bnb_beta"])
    e = prelu_np(npf(p["emb"]), float(p["emb_alpha"]))
    e = e * asn + abt
    cc = e @ npf(p["w_c1d"]) + npf(p["b_c1d"])
    t_comm = prelu_np(cc * bs + bb, float(p["cnn_alpha"]))          # (8, 16)
    gi_tbl = t_comm @ npf(p["w_ih"]) + npf(p["b_ih"])               # (8, 48)

    s1, b1v = bn_affine_np(p["bn1_gamma"], p["bn1_beta"])
    s2, b2v = bn_affine_np(p["bn2_gamma"], p["bn2_beta"])
    w_clin = npf(p["w_clin"]) * s2[None, :]
    b_clin = npf(p["b_clin"]) * s2 + b2v

    # ---- Other_IN with BatchNorm folded ------------------------------------------
    os_, ob = bn_affine_np(p["oth_bn_gamma"], p["oth_bn_beta"])
    w_oth = npf(p["w_other"]) * os_[None, :]
    b_oth = npf(p["b_other"]) * os_ + ob

    # ---- small vectors packed into one (8, 48) VMEM array ------------------------
    vecs = np.zeros((N_VEC_ROWS, VW), np.float32)

    def setrow(i, v):
        v = np.asarray(v, np.float32).reshape(-1)
        vecs[i, :v.shape[0]] = v

    setrow(R_RLIN_B, b_rlin)
    setrow(R_GRU_BHH, p["b_hh"])
    setrow(R_BN1_S, s1)
    setrow(R_BN1_B, b1v)
    setrow(R_CLIN_B, b_clin)
    setrow(R_OTH_B, b_oth)

    alphas = np.zeros((8,), np.float32)
    alphas[A_CONV] = float(p["conv_alpha"])
    alphas[A_RLIN] = float(p["rlin_alpha"])
    alphas[A_CLIN] = float(p["clin_alpha"])
    alphas[A_BN2] = float(p["bn2_alpha"])
    alphas[A_OTH] = float(p["oth_alpha"])

    return {
        "alphas": jnp.asarray(alphas),
        "vecs": jnp.asarray(vecs, jnp.float32),
        "w_conv": jnp.asarray(w_conv, jnp.bfloat16),                 # bf16 MXU weight
        "conv_bias": jnp.asarray(conv_bias.reshape(1, -1), jnp.float32),
        "w_rgbd_lin": jnp.asarray(w_rlin, jnp.float32),
        "gi_tbl": jnp.asarray(gi_tbl, jnp.float32),
        "w_hh": jnp.asarray(p["w_hh"], jnp.float32),
        "w_clin": jnp.asarray(w_clin, jnp.float32),
        "w_other": jnp.asarray(w_oth, jnp.float32),
    }


# ---------------------------- pure-JAX reference ------------------------------
def reference_forward(rgbd, comm, other, p):
    hp = jax.lax.Precision.HIGHEST
    if rgbd.ndim == 4:
        rgbd = rgbd[:, None]
    if comm.ndim == 2:
        comm = comm[None]
    if comm.ndim == 3:
        comm = comm[:, None]
    if other.ndim == 2:
        other = other[:, None]
    episodes, steps = rgbd.shape[0], rgbd.shape[1]
    B = episodes * steps
    HS = HIDDEN_SIZE

    def prelu(x, a):
        return jnp.where(x >= 0.0, x, a * x)

    # RGBD_IN
    x = rgbd.reshape(B, IMAGE_SIZE, IMAGE_SIZE, 4).astype(jnp.float32)
    x = x * 2.0 - 1.0
    s0, b0 = bn_affine(p["bn0_gamma"], p["bn0_beta"])
    x = x * s0 + b0
    outs = []
    for wname, bname, k in (("w1", "b1", 1), ("w3a", "b3a", 3),
                            ("w3b", "b3b", 3), ("w5", "b5", 5)):
        pad = k // 2
        o = jax.lax.conv_general_dilated(
            x, p[wname], window_strides=(1, 1), padding=[(pad, pad), (pad, pad)],
            dimension_numbers=("NHWC", "HWIO", "NHWC"), precision=hp)
        outs.append(o + p[bname])
    y = jnp.concatenate(outs, axis=-1)
    cs, cb = bn_affine(p["conv_bn_gamma"], p["conv_bn_beta"])
    y = prelu(y * cs + cb, p["conv_alpha"])
    flat = y.reshape(B, IMAGE_SIZE * IMAGE_SIZE * HS)
    r = jnp.dot(flat, p["w_rgbd_lin"], precision=hp) + p["b_rgbd_lin"]
    rs, rb = bn_affine(p["rlin_bn_gamma"], p["rlin_bn_beta"])
    rgbd_enc = prelu(r * rs + rb, p["rlin_alpha"])

    # Comm_IN
    c = comm.reshape(B, comm.shape[2], comm.shape[3]).astype(jnp.float32)
    pad_len = MAX_COMM_LEN - c.shape[1]
    if pad_len > 0:
        c = jnp.pad(c, ((0, 0), (0, pad_len), (0, 0)))
    tok = jnp.argmax(c, axis=-1)
    e = p["emb"][tok]
    e = prelu(e, p["emb_alpha"])
    asn, abt = bn_affine(p["bna_gamma"], p["bna_beta"])
    e = e * asn + abt
    cc = jnp.einsum("ble,eh->blh", e, p["w_c1d"], precision=hp) + p["b_c1d"]
    bs, bb = bn_affine(p["bnb_gamma"], p["bnb_beta"])
    cc = prelu(cc * bs + bb, p["cnn_alpha"])
    h = jnp.zeros((B, HS), jnp.float32)
    for t in range(MAX_COMM_LEN):
        x_t = cc[:, t, :]
        gi = jnp.dot(x_t, p["w_ih"], precision=hp) + p["b_ih"]
        gh = jnp.dot(h, p["w_hh"], precision=hp) + p["b_hh"]
        rg = jax.nn.sigmoid(gi[:, :HS] + gh[:, :HS])
        zg = jax.nn.sigmoid(gi[:, HS:2 * HS] + gh[:, HS:2 * HS])
        ng = jnp.tanh(gi[:, 2 * HS:] + rg * gh[:, 2 * HS:])
        h = (1.0 - zg) * ng + zg * h
    # (comm[:, :, -1] keeps only the last GRU step; affine BN / PReLU / Linear commute)
    s1, b1 = bn_affine(p["bn1_gamma"], p["bn1_beta"])
    h = prelu(h * s1 + b1, p["clin_alpha"])
    cm = jnp.dot(h, p["w_clin"], precision=hp) + p["b_clin"]
    s2, b2 = bn_affine(p["bn2_gamma"], p["bn2_beta"])
    comm_enc = prelu(cm * s2 + b2, p["bn2_alpha"])

    # Other_IN
    ot = other.reshape(B, OTHER_SHAPE).astype(jnp.float32)
    o = jnp.dot(ot, p["w_other"], precision=hp) + p["b_other"]
    os_, ob = bn_affine(p["oth_bn_gamma"], p["oth_bn_beta"])
    other_enc = prelu(o * os_ + ob, p["oth_alpha"])

    return jnp.concatenate([rgbd_enc, comm_enc, other_enc],
                           axis=-1).reshape(episodes, steps, OBS_SIZE)


# ------------------------------------ main ------------------------------------
if __name__ == "__main__":
    key = jax.random.PRNGKey(0)
    kparam, k1, k2, k3 = jax.random.split(key, 4)
    params = init_params(kparam)
    kparams = prep_kernel_params(params)

    episodes, steps = 2, 3
    rgbd = jax.random.uniform(k1, (episodes, steps, IMAGE_SIZE, IMAGE_SIZE, 4),
                              jnp.float32)
    comm = jax.random.normal(k2, (episodes, steps, MAX_COMM_LEN, COMM_SHAPE),
                             jnp.float32)
    other = jax.random.normal(k3, (episodes, steps, OTHER_SHAPE), jnp.float32)

    fwd = jax.jit(obs_in_forward)
    out = jax.block_until_ready(fwd(rgbd, comm, other, kparams))
    ref = jax.block_until_ready(reference_forward(rgbd, comm, other, params))

    assert out.shape == (episodes, steps, OBS_SIZE), out.shape
    # tolerance reflects the bf16 RGBD conv matmul on the MXU (f32 accumulation);
    # all other paths are f32.
    np.testing.assert_allclose(np.asarray(out), np.asarray(ref),
                               atol=1e-2, rtol=1e-2)
    print("KERNEL_OK")
</pallas_src>

<mosaic_0001>
module attributes {stable_mosaic.version = 11 : i64} {
  func.func @obs_in_kernel(%arg0: i32, %arg1: memref<8x256xbf16, #tpu.memory_space<vmem>>, %arg2: memref<5x8x8xf32, #tpu.memory_space<vmem>>, %arg3: memref<8x8xf32, #tpu.memory_space<vmem>>, %arg4: memref<8xf32, #tpu.memory_space<smem>>, %arg5: memref<8x48xf32, #tpu.memory_space<vmem>>, %arg6: memref<256x1024xbf16, #tpu.memory_space<vmem>>, %arg7: memref<1x1024xf32, #tpu.memory_space<vmem>>, %arg8: memref<1024x16xf32, #tpu.memory_space<vmem>>, %arg9: memref<8x48xf32, #tpu.memory_space<vmem>>, %arg10: memref<16x48xf32, #tpu.memory_space<vmem>>, %arg11: memref<16x16xf32, #tpu.memory_space<vmem>>, %arg12: memref<8x8xf32, #tpu.memory_space<vmem>>, %arg13: memref<8x40xf32, #tpu.memory_space<vmem>>) attributes {dimension_semantics = [#tpu.dimension_semantics<parallel>], iteration_bounds = array<i64: 1>, scalar_prefetch = 0 : i64, scratch_operands = 0 : i64, tpu.core_type = #tpu.core_type<tc>, window_params = [{transform_indices = @transform_0, window_bounds = array<i64: 8, 256>}, {transform_indices = @transform_1, window_bounds = array<i64: 5, 8, 8>}, {transform_indices = @transform_2, window_bounds = array<i64: 8, 8>}, {transform_indices = @transform_3, window_bounds = array<i64: 8>}, {pipeline_mode = #tpu.pipeline_mode<synchronous>, transform_indices = @transform_4, window_bounds = array<i64: 8, 48>}, {pipeline_mode = #tpu.pipeline_mode<synchronous>, transform_indices = @transform_5, window_bounds = array<i64: 256, 1024>}, {pipeline_mode = #tpu.pipeline_mode<synchronous>, transform_indices = @transform_6, window_bounds = array<i64: 1, 1024>}, {pipeline_mode = #tpu.pipeline_mode<synchronous>, transform_indices = @transform_7, window_bounds = array<i64: 1024, 16>}, {pipeline_mode = #tpu.pipeline_mode<synchronous>, transform_indices = @transform_8, window_bounds = array<i64: 8, 48>}, {pipeline_mode = #tpu.pipeline_mode<synchronous>, transform_indices = @transform_9, window_bounds = array<i64: 16, 48>}, {pipeline_mode = #tpu.pipeline_mode<synchronous>, transform_indices = @transform_10, window_bounds = array<i64: 16, 16>}, {pipeline_mode = #tpu.pipeline_mode<synchronous>, transform_indices = @transform_11, window_bounds = array<i64: 8, 8>}, {transform_indices = @transform_12, window_bounds = array<i64: 8, 40>}]} {
    %c0 = arith.constant 0 : index
    %c0_0 = arith.constant 0 : index
    %0 = vector.load %arg1[%c0, %c0_0] : memref<8x256xbf16, #tpu.memory_space<vmem>>, vector<8x256xbf16>
    %c0_1 = arith.constant 0 : index
    %c0_2 = arith.constant 0 : index
    %1 = vector.load %arg6[%c0_1, %c0_2] : memref<256x1024xbf16, #tpu.memory_space<vmem>>, vector<256x1024xbf16>
    %cst = arith.constant dense<0.000000e+00> : vector<8x1024xf32>
    %2 = tpu.matmul %0, %1, %cst {dimension_numbers = #tpu.dot_dimension_numbers<[1], [0], [0], [1], [0, 0, 1, 1], [], []>} : vector<8x256xbf16>, vector<256x1024xbf16>, vector<8x1024xf32> -> vector<8x1024xf32>
    %c0_3 = arith.constant 0 : index
    %c0_4 = arith.constant 0 : index
    %3 = vector.load %arg7[%c0_3, %c0_4] : memref<1x1024xf32, #tpu.memory_space<vmem>>, vector<1x1024xf32>
    %4 = vector.broadcast %3 : vector<1x1024xf32> to vector<8x1024xf32>
    %5 = arith.addf %2, %4 : vector<8x1024xf32>
    %c0_5 = arith.constant 0 : index
    %6 = memref.load %arg4[%c0_5] : memref<8xf32, #tpu.memory_space<smem>>
    %cst_6 = arith.constant 0.000000e+00 : f32
    %7 = vector.broadcast %cst_6 : f32 to vector<8x1024xf32>
    %8 = arith.cmpf oge, %5, %7 : vector<8x1024xf32>
    %9 = vector.broadcast %6 : f32 to vector<8x1024xf32>
    %10 = arith.mulf %9, %5 : vector<8x1024xf32>
    %11 = arith.select %8, %5, %10 : vector<8x1024xi1>, vector<8x1024xf32>
    %c0_7 = arith.constant 0 : index
    %c0_8 = arith.constant 0 : index
    %12 = vector.load %arg8[%c0_7, %c0_8] : memref<1024x16xf32, #tpu.memory_space<vmem>>, vector<1024x16xf32>
    %cst_9 = arith.constant dense<0.000000e+00> : vector<8x16xf32>
    %13 = tpu.matmul %11, %12, %cst_9 {dimension_numbers = #tpu.dot_dimension_numbers<[1], [0], [0], [1], [0, 0, 1, 1], [], []>} : vector<8x1024xf32>, vector<1024x16xf32>, vector<8x16xf32> -> vector<8x16xf32>
    %c0_10 = arith.constant 0 : index
    %c0_11 = arith.constant 0 : index
    %14 = vector.load %arg5[%c0_10, %c0_11] : memref<8x48xf32, #tpu.memory_space<vmem>>, vector<1x16xf32>
    %15 = vector.broadcast %14 : vector<1x16xf32> to vector<8x16xf32>
    %16 = arith.addf %13, %15 : vector<8x16xf32>
    %c1 = arith.constant 1 : index
    %17 = memref.load %arg4[%c1] : memref<8xf32, #tpu.memory_space<smem>>
    %cst_12 = arith.constant 0.000000e+00 : f32
    %18 = vector.broadcast %cst_12 : f32 to vector<8x16xf32>
    %19 = arith.cmpf oge, %16, %18 : vector<8x16xf32>
    %20 = vector.broadcast %17 : f32 to vector<8x16xf32>
    %21 = arith.mulf %20, %16 : vector<8x16xf32>
    %22 = arith.select %19, %16, %21 : vector<8x16xi1>, vector<8x16xf32>
    %c0_13 = arith.constant 0 : index
    %c0_14 = arith.constant 0 : index
    %c0_15 = arith.constant 0 : index
    %23 = vector.load %arg2[%c0_13, %c0_14, %c0_15] : memref<5x8x8xf32, #tpu.memory_space<vmem>>, vector<5x8x8xf32>
    %24 = vector.shape_cast %23 : vector<5x8x8xf32> to vector<40x8xf32>
    %c0_16 = arith.constant 0 : index
    %c0_17 = arith.constant 0 : index
    %25 = vector.load %arg9[%c0_16, %c0_17] : memref<8x48xf32, #tpu.memory_space<vmem>>, vector<8x48xf32>
    %cst_18 = arith.constant dense<0.000000e+00> : vector<40x48xf32>
    %26 = tpu.matmul %24, %25, %cst_18 {dimension_numbers = #tpu.dot_dimension_numbers<[1], [0], [0], [1], [0, 0, 1, 1], [], []>} : vector<40x8xf32>, vector<8x48xf32>, vector<40x48xf32> -> vector<40x48xf32>
    %c1_19 = arith.constant 1 : index
    %c0_20 = arith.constant 0 : index
    %27 = vector.load %arg5[%c1_19, %c0_20] : memref<8x48xf32, #tpu.memory_space<vmem>>, vector<1x48xf32>
    %cst_21 = arith.constant 0.000000e+00 : f32
    %28 = vector.broadcast %cst_21 : f32 to vector<8x16xf32>
    %29 = vector.extract_strided_slice %26 {offsets = [0, 0], sizes = [8, 48], strides = [1, 1]} : vector<40x48xf32> to vector<8x48xf32>
    %c0_22 = arith.constant 0 : index
    %c0_23 = arith.constant 0 : index
    %30 = vector.load %arg10[%c0_22, %c0_23] : memref<16x48xf32, #tpu.memory_space<vmem>>, vector<16x48xf32>
    %cst_24 = arith.constant dense<0.000000e+00> : vector<8x48xf32>
    %31 = tpu.matmul %28, %30, %cst_24 {dimension_numbers = #tpu.dot_dimension_numbers<[1], [0], [0], [1], [0, 0, 1, 1], [], []>} : vector<8x16xf32>, vector<16x48xf32>, vector<8x48xf32> -> vector<8x48xf32>
    %32 = vector.broadcast %27 : vector<1x48xf32> to vector<8x48xf32>
    %33 = arith.addf %31, %32 : vector<8x48xf32>
    %34 = vector.extract_strided_slice %29 {offsets = [0, 0], sizes = [8, 16], strides = [1, 1]} : vector<8x48xf32> to vector<8x16xf32>
    %35 = vector.extract_strided_slice %33 {offsets = [0, 0], sizes = [8, 16], strides = [1, 1]} : vector<8x48xf32> to vector<8x16xf32>
    %36 = arith.addf %34, %35 : vector<8x16xf32>
    %37 = arith.negf %36 : vector<8x16xf32>
    %38 = math.exp %37 : vector<8x16xf32>
    %cst_25 = arith.constant 1.000000e+00 : f32
    %39 = vector.broadcast %cst_25 : f32 to vector<8x16xf32>
    %40 = arith.addf %39, %38 : vector<8x16xf32>
    %41 = arith.divf %39, %40 : vector<8x16xf32>
    %42 = vector.extract_strided_slice %29 {offsets = [0, 16], sizes = [8, 16], strides = [1, 1]} : vector<8x48xf32> to vector<8x16xf32>
    %43 = vector.extract_strided_slice %33 {offsets = [0, 16], sizes = [8, 16], strides = [1, 1]} : vector<8x48xf32> to vector<8x16xf32>
    %44 = arith.addf %42, %43 : vector<8x16xf32>
    %45 = arith.negf %44 : vector<8x16xf32>
    %46 = math.exp %45 : vector<8x16xf32>
    %cst_26 = arith.constant 1.000000e+00 : f32
    %47 = vector.broadcast %cst_26 : f32 to vector<8x16xf32>
    %48 = arith.addf %47, %46 : vector<8x16xf32>
    %49 = arith.divf %47, %48 : vector<8x16xf32>
    %50 = vector.extract_strided_slice %29 {offsets = [0, 32], sizes = [8, 16], strides = [1, 1]} : vector<8x48xf32> to vector<8x16xf32>
    %51 = vector.extract_strided_slice %33 {offsets = [0, 32], sizes = [8, 16], strides = [1, 1]} : vector<8x48xf32> to vector<8x16xf32>
    %52 = arith.mulf %41, %51 : vector<8x16xf32>
    %53 = arith.addf %50, %52 : vector<8x16xf32>
    %54 = math.tanh %53 : vector<8x16xf32>
    %cst_27 = arith.constant 1.000000e+00 : f32
    %55 = vector.broadcast %cst_27 : f32 to vector<8x16xf32>
    %56 = arith.subf %55, %49 : vector<8x16xf32>
    %57 = arith.mulf %56, %54 : vector<8x16xf32>
    %58 = arith.mulf %49, %28 : vector<8x16xf32>
    %59 = arith.addf %57, %58 : vector<8x16xf32>
    %60 = vector.extract_strided_slice %26 {offsets = [8, 0], sizes = [8, 48], strides = [1, 1]} : vector<40x48xf32> to vector<8x48xf32>
    %c0_28 = arith.constant 0 : index
    %c0_29 = arith.constant 0 : index
    %61 = vector.load %arg10[%c0_28, %c0_29] : memref<16x48xf32, #tpu.memory_space<vmem>>, vector<16x48xf32>
    %cst_30 = arith.constant dense<0.000000e+00> : vector<8x48xf32>
    %62 = tpu.matmul %59, %61, %cst_30 {dimension_numbers = #tpu.dot_dimension_numbers<[1], [0], [0], [1], [0, 0, 1, 1], [], []>} : vector<8x16xf32>, vector<16x48xf32>, vector<8x48xf32> -> vector<8x48xf32>
    %63 = vector.broadcast %27 : vector<1x48xf32> to vector<8x48xf32>
    %64 = arith.addf %62, %63 : vector<8x48xf32>
    %65 = vector.extract_strided_slice %60 {offsets = [0, 0], sizes = [8, 16], strides = [1, 1]} : vector<8x48xf32> to vector<8x16xf32>
    %66 = vector.extract_strided_slice %64 {offsets = [0, 0], sizes = [8, 16], strides = [1, 1]} : vector<8x48xf32> to vector<8x16xf32>
    %67 = arith.addf %65, %66 : vector<8x16xf32>
    %68 = arith.negf %67 : vector<8x16xf32>
    %69 = math.exp %68 : vector<8x16xf32>
    %cst_31 = arith.constant 1.000000e+00 : f32
    %70 = vector.broadcast %cst_31 : f32 to vector<8x16xf32>
    %71 = arith.addf %70, %69 : vector<8x16xf32>
    %72 = arith.divf %70, %71 : vector<8x16xf32>
    %73 = vector.extract_strided_slice %60 {offsets = [0, 16], sizes = [8, 16], strides = [1, 1]} : vector<8x48xf32> to vector<8x16xf32>
    %74 = vector.extract_strided_slice %64 {offsets = [0, 16], sizes = [8, 16], strides = [1, 1]} : vector<8x48xf32> to vector<8x16xf32>
    %75 = arith.addf %73, %74 : vector<8x16xf32>
    %76 = arith.negf %75 : vector<8x16xf32>
    %77 = math.exp %76 : vector<8x16xf32>
    %cst_32 = arith.constant 1.000000e+00 : f32
    %78 = vector.broadcast %cst_32 : f32 to vector<8x16xf32>
    %79 = arith.addf %78, %77 : vector<8x16xf32>
    %80 = arith.divf %78, %79 : vector<8x16xf32>
    %81 = vector.extract_strided_slice %60 {offsets = [0, 32], sizes = [8, 16], strides = [1, 1]} : vector<8x48xf32> to vector<8x16xf32>
    %82 = vector.extract_strided_slice %64 {offsets = [0, 32], sizes = [8, 16], strides = [1, 1]} : vector<8x48xf32> to vector<8x16xf32>
    %83 = arith.mulf %72, %82 : vector<8x16xf32>
    %84 = arith.addf %81, %83 : vector<8x16xf32>
    %85 = math.tanh %84 : vector<8x16xf32>
    %cst_33 = arith.constant 1.000000e+00 : f32
    %86 = vector.broadcast %cst_33 : f32 to vector<8x16xf32>
    %87 = arith.subf %86, %80 : vector<8x16xf32>
    %88 = arith.mulf %87, %85 : vector<8x16xf32>
    %89 = arith.mulf %80, %59 : vector<8x16xf32>
    %90 = arith.addf %88, %89 : vector<8x16xf32>
    %91 = vector.extract_strided_slice %26 {offsets = [16, 0], sizes = [8, 48], strides = [1, 1]} : vector<40x48xf32> to vector<8x48xf32>
    %c0_34 = arith.constant 0 : index
    %c0_35 = arith.constant 0 : index
    %92 = vector.load %arg10[%c0_34, %c0_35] : memref<16x48xf32, #tpu.memory_space<vmem>>, vector<16x48xf32>
    %cst_36 = arith.constant dense<0.000000e+00> : vector<8x48xf32>
    %93 = tpu.matmul %90, %92, %cst_36 {dimension_numbers = #tpu.dot_dimension_numbers<[1], [0], [0], [1], [0, 0, 1, 1], [], []>} : vector<8x16xf32>, vector<16x48xf32>, vector<8x48xf32> -> vector<8x48xf32>
    %94 = vector.broadcast %27 : vector<1x48xf32> to vector<8x48xf32>
    %95 = arith.addf %93, %94 : vector<8x48xf32>
    %96 = vector.extract_strided_slice %91 {offsets = [0, 0], sizes = [8, 16], strides = [1, 1]} : vector<8x48xf32> to vector<8x16xf32>
    %97 = vector.extract_strided_slice %95 {offsets = [0, 0], sizes = [8, 16], strides = [1, 1]} : vector<8x48xf32> to vector<8x16xf32>
    %98 = arith.addf %96, %97 : vector<8x16xf32>
    %99 = arith.negf %98 : vector<8x16xf32>
    %100 = math.exp %99 : vector<8x16xf32>
    %cst_37 = arith.constant 1.000000e+00 : f32
    %101 = vector.broadcast %cst_37 : f32 to vector<8x16xf32>
    %102 = arith.addf %101, %100 : vector<8x16xf32>
    %103 = arith.divf %101, %102 : vector<8x16xf32>
    %104 = vector.extract_strided_slice %91 {offsets = [0, 16], sizes = [8, 16], strides = [1, 1]} : vector<8x48xf32> to vector<8x16xf32>
    %105 = vector.extract_strided_slice %95 {offsets = [0, 16], sizes = [8, 16], strides = [1, 1]} : vector<8x48xf32> to vector<8x16xf32>
    %106 = arith.addf %104, %105 : vector<8x16xf32>
    %107 = arith.negf %106 : vector<8x16xf32>
    %108 = math.exp %107 : vector<8x16xf32>
    %cst_38 = arith.constant 1.000000e+00 : f32
    %109 = vector.broadcast %cst_38 : f32 to vector<8x16xf32>
    %110 = arith.addf %109, %108 : vector<8x16xf32>
    %111 = arith.divf %109, %110 : vector<8x16xf32>
    %112 = vector.extract_strided_slice %91 {offsets = [0, 32], sizes = [8, 16], strides = [1, 1]} : vector<8x48xf32> to vector<8x16xf32>
    %113 = vector.extract_strided_slice %95 {offsets = [0, 32], sizes = [8, 16], strides = [1, 1]} : vector<8x48xf32> to vector<8x16xf32>
    %114 = arith.mulf %103, %113 : vector<8x16xf32>
    %115 = arith.addf %112, %114 : vector<8x16xf32>
    %116 = math.tanh %115 : vector<8x16xf32>
    %cst_39 = arith.constant 1.000000e+00 : f32
    %117 = vector.broadcast %cst_39 : f32 to vector<8x16xf32>
    %118 = arith.subf %117, %111 : vector<8x16xf32>
    %119 = arith.mulf %118, %116 : vector<8x16xf32>
    %120 = arith.mulf %111, %90 : vector<8x16xf32>
    %121 = arith.addf %119, %120 : vector<8x16xf32>
    %122 = vector.extract_strided_slice %26 {offsets = [24, 0], sizes = [8, 48], strides = [1, 1]} : vector<40x48xf32> to vector<8x48xf32>
    %c0_40 = arith.constant 0 : index
    %c0_41 = arith.constant 0 : index
    %123 = vector.load %arg10[%c0_40, %c0_41] : memref<16x48xf32, #tpu.memory_space<vmem>>, vector<16x48xf32>
    %cst_42 = arith.constant dense<0.000000e+00> : vector<8x48xf32>
    %124 = tpu.matmul %121, %123, %cst_42 {dimension_numbers = #tpu.dot_dimension_numbers<[1], [0], [0], [1], [0, 0, 1, 1], [], []>} : vector<8x16xf32>, vector<16x48xf32>, vector<8x48xf32> -> vector<8x48xf32>
    %125 = vector.broadcast %27 : vector<1x48xf32> to vector<8x48xf32>
    %126 = arith.addf %124, %125 : vector<8x48xf32>
    %127 = vector.extract_strided_slice %122 {offsets = [0, 0], sizes = [8, 16], strides = [1, 1]} : vector<8x48xf32> to vector<8x16xf32>
    %128 = vector.extract_strided_slice %126 {offsets = [0, 0], sizes = [8, 16], strides = [1, 1]} : vector<8x48xf32> to vector<8x16xf32>
    %129 = arith.addf %127, %128 : vector<8x16xf32>
    %130 = arith.negf %129 : vector<8x16xf32>
    %131 = math.exp %130 : vector<8x16xf32>
    %cst_43 = arith.constant 1.000000e+00 : f32
    %132 = vector.broadcast %cst_43 : f32 to vector<8x16xf32>
    %133 = arith.addf %132, %131 : vector<8x16xf32>
    %134 = arith.divf %132, %133 : vector<8x16xf32>
    %135 = vector.extract_strided_slice %122 {offsets = [0, 16], sizes = [8, 16], strides = [1, 1]} : vector<8x48xf32> to vector<8x16xf32>
    %136 = vector.extract_strided_slice %126 {offsets = [0, 16], sizes = [8, 16], strides = [1, 1]} : vector<8x48xf32> to vector<8x16xf32>
    %137 = arith.addf %135, %136 : vector<8x16xf32>
    %138 = arith.negf %137 : vector<8x16xf32>
    %139 = math.exp %138 : vector<8x16xf32>
    %cst_44 = arith.constant 1.000000e+00 : f32
    %140 = vector.broadcast %cst_44 : f32 to vector<8x16xf32>
    %141 = arith.addf %140, %139 : vector<8x16xf32>
    %142 = arith.divf %140, %141 : vector<8x16xf32>
    %143 = vector.extract_strided_slice %122 {offsets = [0, 32], sizes = [8, 16], strides = [1, 1]} : vector<8x48xf32> to vector<8x16xf32>
    %144 = vector.extract_strided_slice %126 {offsets = [0, 32], sizes = [8, 16], strides = [1, 1]} : vector<8x48xf32> to vector<8x16xf32>
    %145 = arith.mulf %134, %144 : vector<8x16xf32>
    %146 = arith.addf %143, %145 : vector<8x16xf32>
    %147 = math.tanh %146 : vector<8x16xf32>
    %cst_45 = arith.constant 1.000000e+00 : f32
    %148 = vector.broadcast %cst_45 : f32 to vector<8x16xf32>
    %149 = arith.subf %148, %142 : vector<8x16xf32>
    %150 = arith.mulf %149, %147 : vector<8x16xf32>
    %151 = arith.mulf %142, %121 : vector<8x16xf32>
    %152 = arith.addf %150, %151 : vector<8x16xf32>
    %153 = vector.extract_strided_slice %26 {offsets = [32, 0], sizes = [8, 48], strides = [1, 1]} : vector<40x48xf32> to vector<8x48xf32>
    %c0_46 = arith.constant 0 : index
    %c0_47 = arith.constant 0 : index
    %154 = vector.load %arg10[%c0_46, %c0_47] : memref<16x48xf32, #tpu.memory_space<vmem>>, vector<16x48xf32>
    %cst_48 = arith.constant dense<0.000000e+00> : vector<8x48xf32>
    %155 = tpu.matmul %152, %154, %cst_48 {dimension_numbers = #tpu.dot_dimension_numbers<[1], [0], [0], [1], [0, 0, 1, 1], [], []>} : vector<8x16xf32>, vector<16x48xf32>, vector<8x48xf32> -> vector<8x48xf32>
    %156 = vector.broadcast %27 : vector<1x48xf32> to vector<8x48xf32>
    %157 = arith.addf %155, %156 : vector<8x48xf32>
    %158 = vector.extract_strided_slice %153 {offsets = [0, 0], sizes = [8, 16], strides = [1, 1]} : vector<8x48xf32> to vector<8x16xf32>
    %159 = vector.extract_strided_slice %157 {offsets = [0, 0], sizes = [8, 16], strides = [1, 1]} : vector<8x48xf32> to vector<8x16xf32>
    %160 = arith.addf %158, %159 : vector<8x16xf32>
    %161 = arith.negf %160 : vector<8x16xf32>
    %162 = math.exp %161 : vector<8x16xf32>
    %cst_49 = arith.constant 1.000000e+00 : f32
    %163 = vector.broadcast %cst_49 : f32 to vector<8x16xf32>
    %164 = arith.addf %163, %162 : vector<8x16xf32>
    %165 = arith.divf %163, %164 : vector<8x16xf32>
    %166 = vector.extract_strided_slice %153 {offsets = [0, 16], sizes = [8, 16], strides = [1, 1]} : vector<8x48xf32> to vector<8x16xf32>
    %167 = vector.extract_strided_slice %157 {offsets = [0, 16], sizes = [8, 16], strides = [1, 1]} : vector<8x48xf32> to vector<8x16xf32>
    %168 = arith.addf %166, %167 : vector<8x16xf32>
    %169 = arith.negf %168 : vector<8x16xf32>
    %170 = math.exp %169 : vector<8x16xf32>
    %cst_50 = arith.constant 1.000000e+00 : f32
    %171 = vector.broadcast %cst_50 : f32 to vector<8x16xf32>
    %172 = arith.addf %171, %170 : vector<8x16xf32>
    %173 = arith.divf %171, %172 : vector<8x16xf32>
    %174 = vector.extract_strided_slice %153 {offsets = [0, 32], sizes = [8, 16], strides = [1, 1]} : vector<8x48xf32> to vector<8x16xf32>
    %175 = vector.extract_strided_slice %157 {offsets = [0, 32], sizes = [8, 16], strides = [1, 1]} : vector<8x48xf32> to vector<8x16xf32>
    %176 = arith.mulf %165, %175 : vector<8x16xf32>
    %177 = arith.addf %174, %176 : vector<8x16xf32>
    %178 = math.tanh %177 : vector<8x16xf32>
    %cst_51 = arith.constant 1.000000e+00 : f32
    %179 = vector.broadcast %cst_51 : f32 to vector<8x16xf32>
    %180 = arith.subf %179, %173 : vector<8x16xf32>
    %181 = arith.mulf %180, %178 : vector<8x16xf32>
    %182 = arith.mulf %173, %152 : vector<8x16xf32>
    %183 = arith.addf %181, %182 : vector<8x16xf32>
    %c2 = arith.constant 2 : index
    %c0_52 = arith.constant 0 : index
    %184 = vector.load %arg5[%c2, %c0_52] : memref<8x48xf32, #tpu.memory_space<vmem>>, vector<1x16xf32>
    %185 = vector.broadcast %184 : vector<1x16xf32> to vector<8x16xf32>
    %186 = arith.mulf %183, %185 : vector<8x16xf32>
    %c3 = arith.constant 3 : index
    %c0_53 = arith.constant 0 : index
    %187 = vector.load %arg5[%c3, %c0_53] : memref<8x48xf32, #tpu.memory_space<vmem>>, vector<1x16xf32>
    %188 = vector.broadcast %187 : vector<1x16xf32> to vector<8x16xf32>
    %189 = arith.addf %186, %188 : vector<8x16xf32>
    %c2_54 = arith.constant 2 : index
    %190 = memref.load %arg4[%c2_54] : memref<8xf32, #tpu.memory_space<smem>>
    %cst_55 = arith.constant 0.000000e+00 : f32
    %191 = vector.broadcast %cst_55 : f32 to vector<8x16xf32>
    %192 = arith.cmpf oge, %189, %191 : vector<8x16xf32>
    %193 = vector.broadcast %190 : f32 to vector<8x16xf32>
    %194 = arith.mulf %193, %189 : vector<8x16xf32>
    %195 = arith.select %192, %189, %194 : vector<8x16xi1>, vector<8x16xf32>
    %c0_56 = arith.constant 0 : index
    %c0_57 = arith.constant 0 : index
    %196 = vector.load %arg11[%c0_56, %c0_57] : memref<16x16xf32, #tpu.memory_space<vmem>>, vector<16x16xf32>
    %cst_58 = arith.constant dense<0.000000e+00> : vector<8x16xf32>
    %197 = tpu.matmul %195, %196, %cst_58 {dimension_numbers = #tpu.dot_dimension_numbers<[1], [0], [0], [1], [0, 0, 1, 1], [], []>} : vector<8x16xf32>, vector<16x16xf32>, vector<8x16xf32> -> vector<8x16xf32>
    %c4 = arith.constant 4 : index
    %c0_59 = arith.constant 0 : index
    %198 = vector.load %arg5[%c4, %c0_59] : memref<8x48xf32, #tpu.memory_space<vmem>>, vector<1x16xf32>
    %199 = vector.broadcast %198 : vector<1x16xf32> to vector<8x16xf32>
    %200 = arith.addf %197, %199 : vector<8x16xf32>
    %c3_60 = arith.constant 3 : index
    %201 = memref.load %arg4[%c3_60] : memref<8xf32, #tpu.memory_space<smem>>
    %cst_61 = arith.constant 0.000000e+00 : f32
    %202 = vector.broadcast %cst_61 : f32 to vector<8x16xf32>
    %203 = arith.cmpf oge, %200, %202 : vector<8x16xf32>
    %204 = vector.broadcast %201 : f32 to vector<8x16xf32>
    %205 = arith.mulf %204, %200 : vector<8x16xf32>
    %206 = arith.select %203, %200, %205 : vector<8x16xi1>, vector<8x16xf32>
    %c0_62 = arith.constant 0 : index
    %c0_63 = arith.constant 0 : index
    %207 = vector.load %arg3[%c0_62, %c0_63] : memref<8x8xf32, #tpu.memory_space<vmem>>, vector<8x8xf32>
    %c0_64 = arith.constant 0 : index
    %c0_65 = arith.constant 0 : index
    %208 = vector.load %arg12[%c0_64, %c0_65] : memref<8x8xf32, #tpu.memory_space<vmem>>, vector<8x8xf32>
    %cst_66 = arith.constant dense<0.000000e+00> : vector<8x8xf32>
    %209 = tpu.matmul %207, %208, %cst_66 {dimension_numbers = #tpu.dot_dimension_numbers<[1], [0], [0], [1], [0, 0, 1, 1], [], []>} : vector<8x8xf32>, vector<8x8xf32>, vector<8x8xf32> -> vector<8x8xf32>
    %c5 = arith.constant 5 : index
    %c0_67 = arith.constant 0 : index
    %210 = vector.load %arg5[%c5, %c0_67] : memref<8x48xf32, #tpu.memory_space<vmem>>, vector<1x8xf32>
    %211 = vector.broadcast %210 : vector<1x8xf32> to vector<8x8xf32>
    %212 = arith.addf %209, %211 : vector<8x8xf32>
    %c4_68 = arith.constant 4 : index
    %213 = memref.load %arg4[%c4_68] : memref<8xf32, #tpu.memory_space<smem>>
    %cst_69 = arith.constant 0.000000e+00 : f32
    %214 = vector.broadcast %cst_69 : f32 to vector<8x8xf32>
    %215 = arith.cmpf oge, %212, %214 : vector<8x8xf32>
    %216 = vector.broadcast %213 : f32 to vector<8x8xf32>
    %217 = arith.mulf %216, %212 : vector<8x8xf32>
    %218 = arith.select %215, %212, %217 : vector<8x8xi1>, vector<8x8xf32>
    %c0_70 = arith.constant 0 : index
    %c0_71 = arith.constant 0 : index
    %219 = vector.load %arg13[%c0_70, %c0_71] : memref<8x40xf32, #tpu.memory_space<vmem>>, vector<8x16xf32>
    tpu.vector_store %arg13[%c0_70, %c0_71], %22 {strides = array<i32>} : memref<8x40xf32, #tpu.memory_space<vmem>>, vector<8x16xf32>,
    %c0_72 = arith.constant 0 : index
    %c16 = arith.constant 16 : index
    %220 = vector.load %arg13[%c0_72, %c16] : memref<8x40xf32, #tpu.memory_space<vmem>>, vector<8x16xf32>
    tpu.vector_store %arg13[%c0_72, %c16], %206 {strides = array<i32>} : memref<8x40xf32, #tpu.memory_space<vmem>>, vector<8x16xf32>,
    %c0_73 = arith.constant 0 : index
    %c32 = arith.constant 32 : index
    %221 = vector.load %arg13[%c0_73, %c32] : memref<8x40xf32, #tpu.memory_space<vmem>>, vector<8x8xf32>
    tpu.vector_store %arg13[%c0_73, %c32], %218 {strides = array<i32>} : memref<8x40xf32, #tpu.memory_space<vmem>>, vector<8x8xf32>,
    return
  }
  func.func @transform_0(%arg0: i32) -> (i32, i32) {
    %c0_i32 = arith.constant 0 : i32
    %c0_i32_0 = arith.constant 0 : i32
    return %arg0, %c0_i32 : i32, i32
  }
  func.func @transform_1(%arg0: i32) -> (i32, i32, i32) {
    %c0_i32 = arith.constant 0 : i32
    %c0_i32_0 = arith.constant 0 : i32
    %c0_i32_1 = arith.constant 0 : i32
    return %c0_i32, %arg0, %c0_i32_0 : i32, i32, i32
  }
  func.func @transform_2(%arg0: i32) -> (i32, i32) {
    %c0_i32 = arith.constant 0 : i32
    %c0_i32_0 = arith.constant 0 : i32
    return %arg0, %c0_i32 : i32, i32
  }
  func.func @transform_3(%arg0: i32) -> i32 {
    %c0_i32 = arith.constant 0 : i32
    %c0_i32_0 = arith.constant 0 : i32
    return %c0_i32 : i32
  }
  func.func @transform_4(%arg0: i32) -> (i32, i32) {
    %c0_i32 = arith.constant 0 : i32
    %c0_i32_0 = arith.constant 0 : i32
    %c0_i32_1 = arith.constant 0 : i32
    return %c0_i32, %c0_i32_0 : i32, i32
  }
  func.func @transform_5(%arg0: i32) -> (i32, i32) {
    %c0_i32 = arith.constant 0 : i32
    %c0_i32_0 = arith.constant 0 : i32
    %c0_i32_1 = arith.constant 0 : i32
    return %c0_i32, %c0_i32_0 : i32, i32
  }
  func.func @transform_6(%arg0: i32) -> (i32, i32) {
    %c0_i32 = arith.constant 0 : i32
    %c0_i32_0 = arith.constant 0 : i32
    %c0_i32_1 = arith.constant 0 : i32
    return %c0_i32, %c0_i32_0 : i32, i32
  }
  func.func @transform_7(%arg0: i32) -> (i32, i32) {
    %c0_i32 = arith.constant 0 : i32
    %c0_i32_0 = arith.constant 0 : i32
    %c0_i32_1 = arith.constant 0 : i32
    return %c0_i32, %c0_i32_0 : i32, i32
  }
  func.func @transform_8(%arg0: i32) -> (i32, i32) {
    %c0_i32 = arith.constant 0 : i32
    %c0_i32_0 = arith.constant 0 : i32
    %c0_i32_1 = arith.constant 0 : i32
    return %c0_i32, %c0_i32_0 : i32, i32
  }
  func.func @transform_9(%arg0: i32) -> (i32, i32) {
    %c0_i32 = arith.constant 0 : i32
    %c0_i32_0 = arith.constant 0 : i32
    %c0_i32_1 = arith.constant 0 : i32
    return %c0_i32, %c0_i32_0 : i32, i32
  }
  func.func @transform_10(%arg0: i32) -> (i32, i32) {
    %c0_i32 = arith.constant 0 : i32
    %c0_i32_0 = arith.constant 0 : i32
    %c0_i32_1 = arith.constant 0 : i32
    return %c0_i32, %c0_i32_0 : i32, i32
  }
  func.func @transform_11(%arg0: i32) -> (i32, i32) {
    %c0_i32 = arith.constant 0 : i32
    %c0_i32_0 = arith.constant 0 : i32
    %c0_i32_1 = arith.constant 0 : i32
    return %c0_i32, %c0_i32_0 : i32, i32
  }
  func.func @transform_12(%arg0: i32) -> (i32, i32) {
    %c0_i32 = arith.constant 0 : i32
    %c0_i32_0 = arith.constant 0 : i32
    return %arg0, %c0_i32 : i32, i32
  }
}

</mosaic_0001>

<llo_original>
// kernel: obs_in_forward.1
$region0: #{obs_in_forward.1}
  #allocation0 [shape = 'u32[]', space=smem, size = 0x4, offset = 0x4, fixed_abs, tag = 'smem constant byte address 0x4 - core index']
  #allocation1 [shape = 'u32[72,128]{1,0:T(1,128)}', space=vmem, size = 0x9000, scoped, tag = 'internal scratch']
  %s0 = inlined_call_operand.vmem [shape: bf16[8,256], index: 0, kind: input, shape index: {}]
  %s1 = inlined_call_operand.vmem [shape: f32[5,8,8], index: 1, kind: input, shape index: {}]
  %s2 = inlined_call_operand.vmem [shape: f32[8,8], index: 2, kind: input, shape index: {}]
  %s3 = inlined_call_operand.vmem [shape: f32[8], index: 3, kind: input, shape index: {}]
  %s4 = inlined_call_operand.vmem [shape: f32[8,48], index: 4, kind: input, shape index: {}]
  %s5 = inlined_call_operand.vmem [shape: bf16[256,1024], index: 5, kind: input, shape index: {}]
  %s6 = inlined_call_operand.vmem [shape: f32[1,1024], index: 6, kind: input, shape index: {}]
  %s7 = inlined_call_operand.vmem [shape: f32[1024,16], index: 7, kind: input, shape index: {}]
  %s8 = inlined_call_operand.vmem [shape: f32[8,48], index: 8, kind: input, shape index: {}]
  %s9 = inlined_call_operand.vmem [shape: f32[16,48], index: 9, kind: input, shape index: {}]
  %s10 = inlined_call_operand.vmem [shape: f32[16,16], index: 10, kind: input, shape index: {}]
  %s11 = inlined_call_operand.vmem [shape: f32[8,8], index: 11, kind: input, shape index: {}]
  %s12 = inlined_call_operand.vmem [shape: f32[8,40], index: 12, kind: output, shape index: {}]
  %s13 = sld [smem:[#allocation0]]
  $region62: #{obs_in_forward.1} parent=0
    _
  %s15 = ssub.s32 1, %s13
  %s16 = scalar_select 0, %s15, %s13
  $region1: #{obs_in_forward.1} parent=0
    #allocation2 [shape = 'u8[512]{0}', space=smem, size = 0x200, scoped, tag = 'input window, operand 3, single buffered']
    #allocation3 [shape = 's32[1]{0}', space=sflag, size = 0x4, scoped, tag = 'scoped memory for obs_in_forward.1']
    %17 = vsyncpa [#allocation3], 0
    // Predicated region
    $region2: #{obs_in_forward.1} parent=1 // pred_check
      _
    $region3: #{obs_in_forward.1} parent=1 // pred_check_branch
      %19 = sbr.rel (0) target = $region5
    $region4: #{obs_in_forward.1} parent=1 // pred_region
      _
    $region5: #{obs_in_forward.1} parent=1 // pred_fallthru
      _
    // Predicated region
    $region6: #{obs_in_forward.1} parent=1 // pred_check
      _
    $region7: #{obs_in_forward.1} parent=1 // pred_check_branch
      %21 = sbr.rel (0) target = $region9
    $region8: #{obs_in_forward.1} parent=1 // pred_region
      _
    $region9: #{obs_in_forward.1} parent=1 // pred_fallthru
      _
    // Predicated region
    $region10: #{obs_in_forward.1} parent=1 // pred_check
      _
    $region11: #{obs_in_forward.1} parent=1 // pred_check_branch
      %23 = sbr.rel (0) target = $region13
    $region12: #{obs_in_forward.1} parent=1 // pred_region
      _
    $region13: #{obs_in_forward.1} parent=1 // pred_fallthru
      _
    // Predicated region
    $region14: #{obs_in_forward.1} parent=1 // pred_check
      _
    $region15: #{obs_in_forward.1} parent=1 // pred_check_branch
      %25 = sbr.rel (0) target = $region17
    $region16: #{obs_in_forward.1} parent=1 // pred_region
      %27 = vsyncadd [#allocation3], 0
      %s29 = sshll.u32 %s3, 4
      %s30 = int_to_ptr.vmem [resolvable:$true] %s29
      %32 = dma.vmem_to_smem %s30, 16, [#allocation2], [#allocation3]
    $region17: #{obs_in_forward.1} parent=1 // pred_fallthru
      _
    // Predicated region
    $region18: #{obs_in_forward.1} parent=1 // pred_check
      _
    $region19: #{obs_in_forward.1} parent=1 // pred_check_branch
      %34 = sbr.rel (0) target = $region21
    $region20: #{obs_in_forward.1} parent=1 // pred_region
      _
    $region21: #{obs_in_forward.1} parent=1 // pred_fallthru
      _
    // Predicated region
    $region22: #{obs_in_forward.1} parent=1 // pred_check
      _
    $region23: #{obs_in_forward.1} parent=1 // pred_check_branch
      %36 = sbr.rel (0) target = $region25
    $region24: #{obs_in_forward.1} parent=1 // pred_region
      _
    $region25: #{obs_in_forward.1} parent=1 // pred_fallthru
      _
    // Predicated region
    $region26: #{obs_in_forward.1} parent=1 // pred_check
      _
    $region27: #{obs_in_forward.1} parent=1 // pred_check_branch
      %38 = sbr.rel (0) target = $region29
    $region28: #{obs_in_forward.1} parent=1 // pred_region
      _
    $region29: #{obs_in_forward.1} parent=1 // pred_fallthru
      _
    // Predicated region
    $region30: #{obs_in_forward.1} parent=1 // pred_check
      _
    $region31: #{obs_in_forward.1} parent=1 // pred_check_branch
      %40 = sbr.rel (0) target = $region33
    $region32: #{obs_in_forward.1} parent=1 // pred_region
      _
    $region33: #{obs_in_forward.1} parent=1 // pred_fallthru
      _
    // Predicated region
    $region34: #{obs_in_forward.1} parent=1 // pred_check
      _
    $region35: #{obs_in_forward.1} parent=1 // pred_check_branch
      %42 = sbr.rel (0) target = $region37
    $region36: #{obs_in_forward.1} parent=1 // pred_region
      _
    $region37: #{obs_in_forward.1} parent=1 // pred_fallthru
      _
    // Predicated region
    $region38: #{obs_in_forward.1} parent=1 // pred_check
      _
    $region39: #{obs_in_forward.1} parent=1 // pred_check_branch
      %44 = sbr.rel (0) target = $region41
    $region40: #{obs_in_forward.1} parent=1 // pred_region
      _
    $region41: #{obs_in_forward.1} parent=1 // pred_fallthru
      _
    // Predicated region
    $region42: #{obs_in_forward.1} parent=1 // pred_check
      _
    $region43: #{obs_in_forward.1} parent=1 // pred_check_branch
      %46 = sbr.rel (0) target = $region45
    $region44: #{obs_in_forward.1} parent=1 // pred_region
      _
    $region45: #{obs_in_forward.1} parent=1 // pred_fallthru
      _
    // Predicated region
    $region46: #{obs_in_forward.1} parent=1 // pred_check
      _
    $region47: #{obs_in_forward.1} parent=1 // pred_check_branch
      %48 = sbr.rel (0) target = $region49
    $region48: #{obs_in_forward.1} parent=1 // pred_region
      _
    $region49: #{obs_in_forward.1} parent=1 // pred_fallthru
      _
    // Predicated region
    $region50: #{obs_in_forward.1} parent=1 // pred_check
      _
    $region51: #{obs_in_forward.1} parent=1 // pred_check_branch
      %50 = sbr.rel (0) target = $region53
    $region52: #{obs_in_forward.1} parent=1 // pred_region
      %52 = dma.done [#allocation3], 16
    $region53: #{obs_in_forward.1} parent=1 // pred_fallthru
      _
    %53 = sfence
    %v54 = vld [vmem:[%s0] sm:$0xff]
    %v55 = vld [vmem:[%s5] sm:$0xff]
    %v56 = vld [vmem:[%s5 + $0x8] sm:$0xff]
    %v57 = vld [vmem:[%s5 + $0x10] sm:$0xff]
    %v58 = vld [vmem:[%s5 + $0x18] sm:$0xff]
    %v59 = vld [vmem:[%s5 + $0x20] sm:$0xff]
    %v60 = vld [vmem:[%s5 + $0x28] sm:$0xff]
    %v61 = vld [vmem:[%s5 + $0x30] sm:$0xff]
    %v62 = vld [vmem:[%s5 + $0x38] sm:$0xff]
    %v63 = vld [vmem:[%s5 + $0x40] sm:$0xff]
    %v64 = vld [vmem:[%s5 + $0x48] sm:$0xff]
    %v65 = vld [vmem:[%s5 + $0x50] sm:$0xff]
    %v66 = vld [vmem:[%s5 + $0x58] sm:$0xff]
    %v67 = vld [vmem:[%s5 + $0x60] sm:$0xff]
    %v68 = vld [vmem:[%s5 + $0x68] sm:$0xff]
    %v69 = vld [vmem:[%s5 + $0x70] sm:$0xff]
    %v70 = vld [vmem:[%s5 + $0x78] sm:$0xff]
    %v71 = vld [vmem:[%s5 + $0x80] sm:$0xff]
    %v72 = vld [vmem:[%s5 + $0x88] sm:$0xff]
    %v73 = vld [vmem:[%s5 + $0x90] sm:$0xff]
    %v74 = vld [vmem:[%s5 + $0x98] sm:$0xff]
    %v75 = vld [vmem:[%s5 + $0xa0] sm:$0xff]
    %v76 = vld [vmem:[%s5 + $0xa8] sm:$0xff]
    %v77 = vld [vmem:[%s5 + $0xb0] sm:$0xff]
    %v78 = vld [vmem:[%s5 + $0xb8] sm:$0xff]
    %v79 = vld [vmem:[%s5 + $0xc0] sm:$0xff]
    %v80 = vld [vmem:[%s5 + $0xc8] sm:$0xff]
    %v81 = vld [vmem:[%s5 + $0xd0] sm:$0xff]
    %v82 = vld [vmem:[%s5 + $0xd8] sm:$0xff]
    %v83 = vld [vmem:[%s5 + $0xe0] sm:$0xff]
    %v84 = vld [vmem:[%s5 + $0xe8] sm:$0xff]
    %v85 = vld [vmem:[%s5 + $0xf0] sm:$0xff]
    %v86 = vld [vmem:[%s5 + $0xf8] sm:$0xff]
    %v87 = vld [vmem:[%s5 + $0x100] sm:$0xff]
    %v88 = vld [vmem:[%s5 + $0x108] sm:$0xff]
    %v89 = vld [vmem:[%s5 + $0x110] sm:$0xff]
    %v90 = vld [vmem:[%s5 + $0x118] sm:$0xff]
    %v91 = vld [vmem:[%s5 + $0x120] sm:$0xff]
    %v92 = vld [vmem:[%s5 + $0x128] sm:$0xff]
    %v93 = vld [vmem:[%s5 + $0x130] sm:$0xff]
    %v94 = vld [vmem:[%s5 + $0x138] sm:$0xff]
    %v95 = vld [vmem:[%s5 + $0x140] sm:$0xff]
    %v96 = vld [vmem:[%s5 + $0x148] sm:$0xff]
    %v97 = vld [vmem:[%s5 + $0x150] sm:$0xff]
    %v98 = vld [vmem:[%s5 + $0x158] sm:$0xff]
    %v99 = vld [vmem:[%s5 + $0x160] sm:$0xff]
    %v100 = vld [vmem:[%s5 + $0x168] sm:$0xff]
    %v101 = vld [vmem:[%s5 + $0x170] sm:$0xff]
    %v102 = vld [vmem:[%s5 + $0x178] sm:$0xff]
    %v103 = vld [vmem:[%s5 + $0x180] sm:$0xff]
    %v104 = vld [vmem:[%s5 + $0x188] sm:$0xff]
    %v105 = vld [vmem:[%s5 + $0x190] sm:$0xff]
    %v106 = vld [vmem:[%s5 + $0x198] sm:$0xff]
    %v107 = vld [vmem:[%s5 + $0x1a0] sm:$0xff]
    %v108 = vld [vmem:[%s5 + $0x1a8] sm:$0xff]
    %v109 = vld [vmem:[%s5 + $0x1b0] sm:$0xff]
    %v110 = vld [vmem:[%s5 + $0x1b8] sm:$0xff]
    %v111 = vld [vmem:[%s5 + $0x1c0] sm:$0xff]
    %v112 = vld [vmem:[%s5 + $0x1c8] sm:$0xff]
    %v113 = vld [vmem:[%s5 + $0x1d0] sm:$0xff]
    %v114 = vld [vmem:[%s5 + $0x1d8] sm:$0xff]
    %v115 = vld [vmem:[%s5 + $0x1e0] sm:$0xff]
    %v116 = vld [vmem:[%s5 + $0x1e8] sm:$0xff]
    %v117 = vld [vmem:[%s5 + $0x1f0] sm:$0xff]
    %v118 = vld [vmem:[%s5 + $0x1f8] sm:$0xff]
    %v119 = vld [vmem:[%s5 + $0x200] sm:$0xff]
    %v120 = vld [vmem:[%s5 + $0x208] sm:$0xff]
    %v121 = vld [vmem:[%s5 + $0x210] sm:$0xff]
    %v122 = vld [vmem:[%s5 + $0x218] sm:$0xff]
    %v123 = vld [vmem:[%s5 + $0x220] sm:$0xff]
    %v124 = vld [vmem:[%s5 + $0x228] sm:$0xff]
    %v125 = vld [vmem:[%s5 + $0x230] sm:$0xff]
    %v126 = vld [vmem:[%s5 + $0x238] sm:$0xff]
    %v127 = vld [vmem:[%s5 + $0x240] sm:$0xff]
    %v128 = vld [vmem:[%s5 + $0x248] sm:$0xff]
    %v129 = vld [vmem:[%s5 + $0x250] sm:$0xff]
    %v130 = vld [vmem:[%s5 + $0x258] sm:$0xff]
    %v131 = vld [vmem:[%s5 + $0x260] sm:$0xff]
    %v132 = vld [vmem:[%s5 + $0x268] sm:$0xff]
    %v133 = vld [vmem:[%s5 + $0x270] sm:$0xff]
    %v134 = vld [vmem:[%s5 + $0x278] sm:$0xff]
    %v135 = vld [vmem:[%s5 + $0x280] sm:$0xff]
    %v136 = vld [vmem:[%s5 + $0x288] sm:$0xff]
    %v137 = vld [vmem:[%s5 + $0x290] sm:$0xff]
    %v138 = vld [vmem:[%s5 + $0x298] sm:$0xff]
    %v139 = vld [vmem:[%s5 + $0x2a0] sm:$0xff]
    %v140 = vld [vmem:[%s5 + $0x2a8] sm:$0xff]
    %v141 = vld [vmem:[%s5 + $0x2b0] sm:$0xff]
    %v142 = vld [vmem:[%s5 + $0x2b8] sm:$0xff]
    %v143 = vld [vmem:[%s5 + $0x2c0] sm:$0xff]
    %v144 = vld [vmem:[%s5 + $0x2c8] sm:$0xff]
    %v145 = vld [vmem:[%s5 + $0x2d0] sm:$0xff]
    %v146 = vld [vmem:[%s5 + $0x2d8] sm:$0xff]
    %v147 = vld [vmem:[%s5 + $0x2e0] sm:$0xff]
    %v148 = vld [vmem:[%s5 + $0x2e8] sm:$0xff]
    %v149 = vld [vmem:[%s5 + $0x2f0] sm:$0xff]
    %v150 = vld [vmem:[%s5 + $0x2f8] sm:$0xff]
    %v151 = vld [vmem:[%s5 + $0x300] sm:$0xff]
    %v152 = vld [vmem:[%s5 + $0x308] sm:$0xff]
    %v153 = vld [vmem:[%s5 + $0x310] sm:$0xff]
    %v154 = vld [vmem:[%s5 + $0x318] sm:$0xff]
    %v155 = vld [vmem:[%s5 + $0x320] sm:$0xff]
    %v156 = vld [vmem:[%s5 + $0x328] sm:$0xff]
    %v157 = vld [vmem:[%s5 + $0x330] sm:$0xff]
    %v158 = vld [vmem:[%s5 + $0x338] sm:$0xff]
    %v159 = vld [vmem:[%s5 + $0x340] sm:$0xff]
    %v160 = vld [vmem:[%s5 + $0x348] sm:$0xff]
    %v161 = vld [vmem:[%s5 + $0x350] sm:$0xff]
    %v162 = vld [vmem:[%s5 + $0x358] sm:$0xff]
    %v163 = vld [vmem:[%s5 + $0x360] sm:$0xff]
    %v164 = vld [vmem:[%s5 + $0x368] sm:$0xff]
    %v165 = vld [vmem:[%s5 + $0x370] sm:$0xff]
    %v166 = vld [vmem:[%s5 + $0x378] sm:$0xff]
    %v167 = vld [vmem:[%s5 + $0x380] sm:$0xff]
    %v168 = vld [vmem:[%s5 + $0x388] sm:$0xff]
    %v169 = vld [vmem:[%s5 + $0x390] sm:$0xff]
    %v170 = vld [vmem:[%s5 + $0x398] sm:$0xff]
    %v171 = vld [vmem:[%s5 + $0x3a0] sm:$0xff]
    %v172 = vld [vmem:[%s5 + $0x3a8] sm:$0xff]
    %v173 = vld [vmem:[%s5 + $0x3b0] sm:$0xff]
    %v174 = vld [vmem:[%s5 + $0x3b8] sm:$0xff]
    %v175 = vld [vmem:[%s5 + $0x3c0] sm:$0xff]
    %v176 = vld [vmem:[%s5 + $0x3c8] sm:$0xff]
    %v177 = vld [vmem:[%s5 + $0x3d0] sm:$0xff]
    %v178 = vld [vmem:[%s5 + $0x3d8] sm:$0xff]
    %v179 = vld [vmem:[%s5 + $0x3e0] sm:$0xff]
    %v180 = vld [vmem:[%s5 + $0x3e8] sm:$0xff]
    %v181 = vld [vmem:[%s5 + $0x3f0] sm:$0xff]
    %v182 = vld [vmem:[%s5 + $0x3f8] sm:$0xff]
    %v183 = vld [vmem:[%s6] sm:$0xff]
    %v185 = vperm.slane %v183, 0
    %v186 = vperm.slane %v183, 1
    %v187 = vperm.slane %v183, 2
    %v188 = vperm.slane %v183, 3
    %v189 = vperm.slane %v183, 4
    %v190 = vperm.slane %v183, 5
    %v191 = vperm.slane %v183, 6
    %v192 = vperm.slane %v183, 7
    %v202 = vunpack.c.l.b16 %v54
    %v203 = vunpack.c.h.b16 %v54
    %v204 = vpack.c.b16 %v202, %v202
    %v205 = vpack.c.b16 %v203, %v203
    %v336 = vunpack.c.l.b16 %v55
    %v337 = vunpack.c.h.b16 %v55
    %v338 = vunpack.c.l.b16 %v56
    %v339 = vunpack.c.h.b16 %v56
    %v340 = vunpack.c.l.b16 %v57
    %v341 = vunpack.c.h.b16 %v57
    %v342 = vunpack.c.l.b16 %v58
    %v343 = vunpack.c.h.b16 %v58
    %v344 = vunpack.c.l.b16 %v59
    %v345 = vunpack.c.h.b16 %v59
    %v346 = vunpack.c.l.b16 %v60
    %v347 = vunpack.c.h.b16 %v60
    %v348 = vunpack.c.l.b16 %v61
    %v349 = vunpack.c.h.b16 %v61
    %v350 = vunpack.c.l.b16 %v62
    %v351 = vunpack.c.h.b16 %v62
    %v352 = vunpack.c.l.b16 %v63
    %v353 = vunpack.c.h.b16 %v63
    %v354 = vunpack.c.l.b16 %v64
    %v355 = vunpack.c.h.b16 %v64
    %v356 = vunpack.c.l.b16 %v65
    %v357 = vunpack.c.h.b16 %v65
    %v358 = vunpack.c.l.b16 %v66
    %v359 = vunpack.c.h.b16 %v66
    %v360 = vunpack.c.l.b16 %v67
    %v361 = vunpack.c.h.b16 %v67
    %v362 = vunpack.c.l.b16 %v68
    %v363 = vunpack.c.h.b16 %v68
    %v364 = vunpack.c.l.b16 %v69
    %v365 = vunpack.c.h.b16 %v69
    %v366 = vunpack.c.l.b16 %v70
    %v367 = vunpack.c.h.b16 %v70
    %v368 = vunpack.c.l.b16 %v71
    %v369 = vunpack.c.h.b16 %v71
    %v370 = vunpack.c.l.b16 %v72
    %v371 = vunpack.c.h.b16 %v72
    %v372 = vunpack.c.l.b16 %v73
    %v373 = vunpack.c.h.b16 %v73
    %v374 = vunpack.c.l.b16 %v74
    %v375 = vunpack.c.h.b16 %v74
    %v376 = vunpack.c.l.b16 %v75
    %v377 = vunpack.c.h.b16 %v75
    %v378 = vunpack.c.l.b16 %v76
    %v379 = vunpack.c.h.b16 %v76
    %v380 = vunpack.c.l.b16 %v77
    %v381 = vunpack.c.h.b16 %v77
    %v382 = vunpack.c.l.b16 %v78
    %v383 = vunpack.c.h.b16 %v78
    %v384 = vunpack.c.l.b16 %v79
    %v385 = vunpack.c.h.b16 %v79
    %v386 = vunpack.c.l.b16 %v80
    %v387 = vunpack.c.h.b16 %v80
    %v388 = vunpack.c.l.b16 %v81
    %v389 = vunpack.c.h.b16 %v81
    %v390 = vunpack.c.l.b16 %v82
    %v391 = vunpack.c.h.b16 %v82
    %v392 = vunpack.c.l.b16 %v83
    %v393 = vunpack.c.h.b16 %v83
    %v394 = vunpack.c.l.b16 %v84
    %v395 = vunpack.c.h.b16 %v84
    %v396 = vunpack.c.l.b16 %v85
    %v397 = vunpack.c.h.b16 %v85
    %v398 = vunpack.c.l.b16 %v86
    %v399 = vunpack.c.h.b16 %v86
    %v400 = vunpack.c.l.b16 %v87
    %v401 = vunpack.c.h.b16 %v87
    %v402 = vunpack.c.l.b16 %v88
    %v403 = vunpack.c.h.b16 %v88
    %v404 = vunpack.c.l.b16 %v89
    %v405 = vunpack.c.h.b16 %v89
    %v406 = vunpack.c.l.b16 %v90
    %v407 = vunpack.c.h.b16 %v90
    %v408 = vunpack.c.l.b16 %v91
    %v409 = vunpack.c.h.b16 %v91
    %v410 = vunpack.c.l.b16 %v92
    %v411 = vunpack.c.h.b16 %v92
    %v412 = vunpack.c.l.b16 %v93
    %v413 = vunpack.c.h.b16 %v93
    %v414 = vunpack.c.l.b16 %v94
    %v415 = vunpack.c.h.b16 %v94
    %v416 = vunpack.c.l.b16 %v95
    %v417 = vunpack.c.h.b16 %v95
    %v418 = vunpack.c.l.b16 %v96
    %v419 = vunpack.c.h.b16 %v96
    %v420 = vunpack.c.l.b16 %v97
    %v421 = vunpack.c.h.b16 %v97
    %v422 = vunpack.c.l.b16 %v98
    %v423 = vunpack.c.h.b16 %v98
    %v424 = vunpack.c.l.b16 %v99
    %v425 = vunpack.c.h.b16 %v99
    %v426 = vunpack.c.l.b16 %v100
    %v427 = vunpack.c.h.b16 %v100
    %v428 = vunpack.c.l.b16 %v101
    %v429 = vunpack.c.h.b16 %v101
    %v430 = vunpack.c.l.b16 %v102
    %v431 = vunpack.c.h.b16 %v102
    %v432 = vunpack.c.l.b16 %v103
    %v433 = vunpack.c.h.b16 %v103
    %v434 = vunpack.c.l.b16 %v104
    %v435 = vunpack.c.h.b16 %v104
    %v436 = vunpack.c.l.b16 %v105
    %v437 = vunpack.c.h.b16 %v105
    %v438 = vunpack.c.l.b16 %v106
    %v439 = vunpack.c.h.b16 %v106
    %v440 = vunpack.c.l.b16 %v107
    %v441 = vunpack.c.h.b16 %v107
    %v442 = vunpack.c.l.b16 %v108
    %v443 = vunpack.c.h.b16 %v108
    %v444 = vunpack.c.l.b16 %v109
    %v445 = vunpack.c.h.b16 %v109
    %v446 = vunpack.c.l.b16 %v110
    %v447 = vunpack.c.h.b16 %v110
    %v448 = vunpack.c.l.b16 %v111
    %v449 = vunpack.c.h.b16 %v111
    %v450 = vunpack.c.l.b16 %v112
    %v451 = vunpack.c.h.b16 %v112
    %v452 = vunpack.c.l.b16 %v113
    %v453 = vunpack.c.h.b16 %v113
    %v454 = vunpack.c.l.b16 %v114
    %v455 = vunpack.c.h.b16 %v114
    %v456 = vunpack.c.l.b16 %v115
    %v457 = vunpack.c.h.b16 %v115
    %v458 = vunpack.c.l.b16 %v116
    %v459 = vunpack.c.h.b16 %v116
    %v460 = vunpack.c.l.b16 %v117
    %v461 = vunpack.c.h.b16 %v117
    %v462 = vunpack.c.l.b16 %v118
    %v463 = vunpack.c.h.b16 %v118
    %v464 = vunpack.c.l.b16 %v119
    %v465 = vunpack.c.h.b16 %v119
    %v466 = vunpack.c.l.b16 %v120
    %v467 = vunpack.c.h.b16 %v120
    %v468 = vunpack.c.l.b16 %v121
    %v469 = vunpack.c.h.b16 %v121
    %v470 = vunpack.c.l.b16 %v122
    %v471 = vunpack.c.h.b16 %v122
    %v472 = vunpack.c.l.b16 %v123
    %v473 = vunpack.c.h.b16 %v123
    %v474 = vunpack.c.l.b16 %v124
    %v475 = vunpack.c.h.b16 %v124
    %v476 = vunpack.c.l.b16 %v125
    %v477 = vunpack.c.h.b16 %v125
    %v478 = vunpack.c.l.b16 %v126
    %v479 = vunpack.c.h.b16 %v126
    %v480 = vunpack.c.l.b16 %v127
    %v481 = vunpack.c.h.b16 %v127
    %v482 = vunpack.c.l.b16 %v128
    %v483 = vunpack.c.h.b16 %v128
    %v484 = vunpack.c.l.b16 %v129
    %v485 = vunpack.c.h.b16 %v129
    %v486 = vunpack.c.l.b16 %v130
    %v487 = vunpack.c.h.b16 %v130
    %v488 = vunpack.c.l.b16 %v131
    %v489 = vunpack.c.h.b16 %v131
    %v490 = vunpack.c.l.b16 %v132
    %v491 = vunpack.c.h.b16 %v132
    %v492 = vunpack.c.l.b16 %v133
    %v493 = vunpack.c.h.b16 %v133
    %v494 = vunpack.c.l.b16 %v134
    %v495 = vunpack.c.h.b16 %v134
    %v496 = vunpack.c.l.b16 %v135
    %v497 = vunpack.c.h.b16 %v135
    %v498 = vunpack.c.l.b16 %v136
    %v499 = vunpack.c.h.b16 %v136
    %v500 = vunpack.c.l.b16 %v137
    %v501 = vunpack.c.h.b16 %v137
    %v502 = vunpack.c.l.b16 %v138
    %v503 = vunpack.c.h.b16 %v138
    %v504 = vunpack.c.l.b16 %v139
    %v505 = vunpack.c.h.b16 %v139
    %v506 = vunpack.c.l.b16 %v140
    %v507 = vunpack.c.h.b16 %v140
    %v508 = vunpack.c.l.b16 %v141
    %v509 = vunpack.c.h.b16 %v141
    %v510 = vunpack.c.l.b16 %v142
    %v511 = vunpack.c.h.b16 %v142
    %v512 = vunpack.c.l.b16 %v143
    %v513 = vunpack.c.h.b16 %v143
    %v514 = vunpack.c.l.b16 %v144
    %v515 = vunpack.c.h.b16 %v144
    %v516 = vunpack.c.l.b16 %v145
    %v517 = vunpack.c.h.b16 %v145
    %v518 = vunpack.c.l.b16 %v146
    %v519 = vunpack.c.h.b16 %v146
    %v520 = vunpack.c.l.b16 %v147
    %v521 = vunpack.c.h.b16 %v147
    %v522 = vunpack.c.l.b16 %v148
    %v523 = vunpack.c.h.b16 %v148
    %v524 = vunpack.c.l.b16 %v149
    %v525 = vunpack.c.h.b16 %v149
    %v526 = vunpack.c.l.b16 %v150
    %v527 = vunpack.c.h.b16 %v150
    %v528 = vunpack.c.l.b16 %v151
    %v529 = vunpack.c.h.b16 %v151
    %v530 = vunpack.c.l.b16 %v152
    %v531 = vunpack.c.h.b16 %v152
    %v532 = vunpack.c.l.b16 %v153
    %v533 = vunpack.c.h.b16 %v153
    %v534 = vunpack.c.l.b16 %v154
    %v535 = vunpack.c.h.b16 %v154
    %v536 = vunpack.c.l.b16 %v155
    %v537 = vunpack.c.h.b16 %v155
    %v538 = vunpack.c.l.b16 %v156
    %v539 = vunpack.c.h.b16 %v156
    %v540 = vunpack.c.l.b16 %v157
    %v541 = vunpack.c.h.b16 %v157
    %v542 = vunpack.c.l.b16 %v158
    %v543 = vunpack.c.h.b16 %v158
    %v544 = vunpack.c.l.b16 %v159
    %v545 = vunpack.c.h.b16 %v159
    %v546 = vunpack.c.l.b16 %v160
    %v547 = vunpack.c.h.b16 %v160
    %v548 = vunpack.c.l.b16 %v161
    %v549 = vunpack.c.h.b16 %v161
    %v550 = vunpack.c.l.b16 %v162
    %v551 = vunpack.c.h.b16 %v162
    %v552 = vunpack.c.l.b16 %v163
    %v553 = vunpack.c.h.b16 %v163
    %v554 = vunpack.c.l.b16 %v164
    %v555 = vunpack.c.h.b16 %v164
    %v556 = vunpack.c.l.b16 %v165
    %v557 = vunpack.c.h.b16 %v165
    %v558 = vunpack.c.l.b16 %v166
    %v559 = vunpack.c.h.b16 %v166
    %v560 = vunpack.c.l.b16 %v167
    %v561 = vunpack.c.h.b16 %v167
    %v562 = vunpack.c.l.b16 %v168
    %v563 = vunpack.c.h.b16 %v168
    %v564 = vunpack.c.l.b16 %v169
    %v565 = vunpack.c.h.b16 %v169
    %v566 = vunpack.c.l.b16 %v170
    %v567 = vunpack.c.h.b16 %v170
    %v568 = vunpack.c.l.b16 %v171
    %v569 = vunpack.c.h.b16 %v171
    %v570 = vunpack.c.l.b16 %v172
    %v571 = vunpack.c.h.b16 %v172
    %v572 = vunpack.c.l.b16 %v173
    %v573 = vunpack.c.h.b16 %v173
    %v574 = vunpack.c.l.b16 %v174
    %v575 = vunpack.c.h.b16 %v174
    %v576 = vunpack.c.l.b16 %v175
    %v577 = vunpack.c.h.b16 %v175
    %v578 = vunpack.c.l.b16 %v176
    %v579 = vunpack.c.h.b16 %v176
    %v580 = vunpack.c.l.b16 %v177
    %v581 = vunpack.c.h.b16 %v177
    %v582 = vunpack.c.l.b16 %v178
    %v583 = vunpack.c.h.b16 %v178
    %v584 = vunpack.c.l.b16 %v179
    %v585 = vunpack.c.h.b16 %v179
    %v586 = vunpack.c.l.b16 %v180
    %v587 = vunpack.c.h.b16 %v180
    %v588 = vunpack.c.l.b16 %v181
    %v589 = vunpack.c.h.b16 %v181
    %v590 = vunpack.c.l.b16 %v182
    %v591 = vunpack.c.h.b16 %v182
    %v592 = vpack.c.b16 %v344, %v336
    %v593 = vpack.c.b16 %v345, %v337
    %v594 = vpack.c.b16 %v346, %v338
    %v595 = vpack.c.b16 %v347, %v339
    %v596 = vpack.c.b16 %v348, %v340
    %v597 = vpack.c.b16 %v349, %v341
    %v598 = vpack.c.b16 %v350, %v342
    %v599 = vpack.c.b16 %v351, %v343
    %v600 = vpack.c.b16 %v360, %v352
    %v601 = vpack.c.b16 %v361, %v353
    %v602 = vpack.c.b16 %v362, %v354
    %v603 = vpack.c.b16 %v363, %v355
    %v604 = vpack.c.b16 %v364, %v356
    %v605 = vpack.c.b16 %v365, %v357
    %v606 = vpack.c.b16 %v366, %v358
    %v607 = vpack.c.b16 %v367, %v359
    %v608 = vpack.c.b16 %v376, %v368
    %v609 = vpack.c.b16 %v377, %v369
    %v610 = vpack.c.b16 %v378, %v370
    %v611 = vpack.c.b16 %v379, %v371
    %v612 = vpack.c.b16 %v380, %v372
    %v613 = vpack.c.b16 %v381, %v373
    %v614 = vpack.c.b16 %v382, %v374
    %v615 = vpack.c.b16 %v383, %v375
    %v616 = vpack.c.b16 %v392, %v384
    %v617 = vpack.c.b16 %v393, %v385
    %v618 = vpack.c.b16 %v394, %v386
    %v619 = vpack.c.b16 %v395, %v387
    %v620 = vpack.c.b16 %v396, %v388
    %v621 = vpack.c.b16 %v397, %v389
    %v622 = vpack.c.b16 %v398, %v390
    %v623 = vpack.c.b16 %v399, %v391
    %v624 = vpack.c.b16 %v408, %v400
    %v625 = vpack.c.b16 %v409, %v401
    %v626 = vpack.c.b16 %v410, %v402
    %v627 = vpack.c.b16 %v411, %v403
    %v628 = vpack.c.b16 %v412, %v404
    %v629 = vpack.c.b16 %v413, %v405
    %v630 = vpack.c.b16 %v414, %v406
    %v631 = vpack.c.b16 %v415, %v407
    %v632 = vpack.c.b16 %v424, %v416
    %v633 = vpack.c.b16 %v425, %v417
    %v634 = vpack.c.b16 %v426, %v418
    %v635 = vpack.c.b16 %v427, %v419
    %v636 = vpack.c.b16 %v428, %v420
    %v637 = vpack.c.b16 %v429, %v421
    %v638 = vpack.c.b16 %v430, %v422
    %v639 = vpack.c.b16 %v431, %v423
    %v640 = vpack.c.b16 %v440, %v432
    %v641 = vpack.c.b16 %v441, %v433
    %v642 = vpack.c.b16 %v442, %v434
    %v643 = vpack.c.b16 %v443, %v435
    %v644 = vpack.c.b16 %v444, %v436
    %v645 = vpack.c.b16 %v445, %v437
    %v646 = vpack.c.b16 %v446, %v438
    %v647 = vpack.c.b16 %v447, %v439
    %v648 = vpack.c.b16 %v456, %v448
    %v649 = vpack.c.b16 %v457, %v449
    %v650 = vpack.c.b16 %v458, %v450
    %v651 = vpack.c.b16 %v459, %v451
    %v652 = vpack.c.b16 %v460, %v452
    %v653 = vpack.c.b16 %v461, %v453
    %v654 = vpack.c.b16 %v462, %v454
    %v655 = vpack.c.b16 %v463, %v455
    %v656 = vpack.c.b16 %v472, %v464
    %v657 = vpack.c.b16 %v473, %v465
    %v658 = vpack.c.b16 %v474, %v466
    %v659 = vpack.c.b16 %v475, %v467
    %v660 = vpack.c.b16 %v476, %v468
    %v661 = vpack.c.b16 %v477, %v469
    %v662 = vpack.c.b16 %v478, %v470
    %v663 = vpack.c.b16 %v479, %v471
    %v664 = vpack.c.b16 %v488, %v480
    %v665 = vpack.c.b16 %v489, %v481
    %v666 = vpack.c.b16 %v490, %v482
    %v667 = vpack.c.b16 %v491, %v483
    %v668 = vpack.c.b16 %v492, %v484
    %v669 = vpack.c.b16 %v493, %v485
    %v670 = vpack.c.b16 %v494, %v486
    %v671 = vpack.c.b16 %v495, %v487
    %v672 = vpack.c.b16 %v504, %v496
    %v673 = vpack.c.b16 %v505, %v497
    %v674 = vpack.c.b16 %v506, %v498
    %v675 = vpack.c.b16 %v507, %v499
    %v676 = vpack.c.b16 %v508, %v500
    %v677 = vpack.c.b16 %v509, %v501
    %v678 = vpack.c.b16 %v510, %v502
    %v679 = vpack.c.b16 %v511, %v503
    %v680 = vpack.c.b16 %v520, %v512
    %v681 = vpack.c.b16 %v521, %v513
    %v682 = vpack.c.b16 %v522, %v514
    %v683 = vpack.c.b16 %v523, %v515
    %v684 = vpack.c.b16 %v524, %v516
    %v685 = vpack.c.b16 %v525, %v517
    %v686 = vpack.c.b16 %v526, %v518
    %v687 = vpack.c.b16 %v527, %v519
    %v688 = vpack.c.b16 %v536, %v528
    %v689 = vpack.c.b16 %v537, %v529
    %v690 = vpack.c.b16 %v538, %v530
    %v691 = vpack.c.b16 %v539, %v531
    %v692 = vpack.c.b16 %v540, %v532
    %v693 = vpack.c.b16 %v541, %v533
    %v694 = vpack.c.b16 %v542, %v534
    %v695 = vpack.c.b16 %v543, %v535
    %v696 = vpack.c.b16 %v552, %v544
    %v697 = vpack.c.b16 %v553, %v545
    %v698 = vpack.c.b16 %v554, %v546
    %v699 = vpack.c.b16 %v555, %v547
    %v700 = vpack.c.b16 %v556, %v548
    %v701 = vpack.c.b16 %v557, %v549
    %v702 = vpack.c.b16 %v558, %v550
    %v703 = vpack.c.b16 %v559, %v551
    %v704 = vpack.c.b16 %v568, %v560
    %v705 = vpack.c.b16 %v569, %v561
    %v706 = vpack.c.b16 %v570, %v562
    %v707 = vpack.c.b16 %v571, %v563
    %v708 = vpack.c.b16 %v572, %v564
    %v709 = vpack.c.b16 %v573, %v565
    %v710 = vpack.c.b16 %v574, %v566
    %v711 = vpack.c.b16 %v575, %v567
    %v712 = vpack.c.b16 %v584, %v576
    %v713 = vpack.c.b16 %v585, %v577
    %v714 = vpack.c.b16 %v586, %v578
    %v715 = vpack.c.b16 %v587, %v579
    %v716 = vpack.c.b16 %v588, %v580
    %v717 = vpack.c.b16 %v589, %v581
    %v718 = vpack.c.b16 %v590, %v582
    %v719 = vpack.c.b16 %v591, %v583
    %848 = vmatpush.bf16.msra.mxu0 %v648
    %849 = vmatpush.bf16.msra.mxu0 %v640
    %850 = vmatpush.bf16.msra.mxu0 %v632
    %851 = vmatpush.bf16.msra.mxu0 %v624
    %852 = vmatpush.bf16.msra.mxu0 %v616
    %853 = vmatpush.bf16.msra.mxu0 %v608
    %854 = vmatpush.bf16.msra.mxu0 %v600
    %855 = vmatpush.bf16.msra.mxu0 %v592
    %856 = vmatmul.bf16.gmra.mxu0 %v204
    %v857 = vpop.f32.mrf.mxu0
    %v858 = vadd.f32 %v185, %v857
    %v859 = vpop.f32.mrf.mxu0
    %860 = vdwg.mxu0
    %861 = vmatpush.bf16.msra.mxu0 %v712
    %862 = vmatpush.bf16.msra.mxu0 %v704
    %863 = vmatpush.bf16.msra.mxu0 %v696
    %864 = vmatpush.bf16.msra.mxu0 %v688
    %865 = vmatpush.bf16.msra.mxu0 %v680
    %866 = vmatpush.bf16.msra.mxu0 %v672
    %867 = vmatpush.bf16.msra.mxu0 %v664
    %868 = vmatpush.bf16.msra.mxu0 %v656
    %869 = vmatmul.bf16.gmra.mxu0 %v205
    %v870 = vpop.f32.mrf.mxu0
    %v871 = vadd.f32 %v858, %v870
    %v872 = vpop.f32.mrf.mxu0
    %873 = vdwg.mxu0
    %874 = vmatpush.bf16.msra.mxu0 %v649
    %875 = vmatpush.bf16.msra.mxu0 %v641
    %876 = vmatpush.bf16.msra.mxu0 %v633
    %877 = vmatpush.bf16.msra.mxu0 %v625
    %878 = vmatpush.bf16.msra.mxu0 %v617
    %879 = vmatpush.bf16.msra.mxu0 %v609
    %880 = vmatpush.bf16.msra.mxu0 %v601
    %881 = vmatpush.bf16.msra.mxu0 %v593
    %882 = vmatmul.bf16.gmra.mxu0 %v204
    %v883 = vpop.f32.mrf.mxu0
    %v884 = vadd.f32 %v186, %v883
    %v885 = vpop.f32.mrf.mxu0
    %886 = vdwg.mxu0
    %887 = vmatpush.bf16.msra.mxu0 %v713
    %888 = vmatpush.bf16.msra.mxu0 %v705
    %889 = vmatpush.bf16.msra.mxu0 %v697
    %890 = vmatpush.bf16.msra.mxu0 %v689
    %891 = vmatpush.bf16.msra.mxu0 %v681
    %892 = vmatpush.bf16.msra.mxu0 %v673
    %893 = vmatpush.bf16.msra.mxu0 %v665
    %894 = vmatpush.bf16.msra.mxu0 %v657
    %895 = vmatmul.bf16.gmra.mxu0 %v205
    %v896 = vpop.f32.mrf.mxu0
    %v897 = vadd.f32 %v884, %v896
    %v898 = vpop.f32.mrf.mxu0
    %899 = vdwg.mxu0
    %900 = vmatpush.bf16.msra.mxu0 %v650
    %901 = vmatpush.bf16.msra.mxu0 %v642
    %902 = vmatpush.bf16.msra.mxu0 %v634
    %903 = vmatpush.bf16.msra.mxu0 %v626
    %904 = vmatpush.bf16.msra.mxu0 %v618
    %905 = vmatpush.bf16.msra.mxu0 %v610
    %906 = vmatpush.bf16.msra.mxu0 %v602
    %907 = vmatpush.bf16.msra.mxu0 %v594
    %908 = vmatmul.bf16.gmra.mxu0 %v204
    %v909 = vpop.f32.mrf.mxu0
    %v910 = vadd.f32 %v187, %v909
    %v911 = vpop.f32.mrf.mxu0
    %912 = vdwg.mxu0
    %913 = vmatpush.bf16.msra.mxu0 %v714
    %914 = vmatpush.bf16.msra.mxu0 %v706
    %915 = vmatpush.bf16.msra.mxu0 %v698
    %916 = vmatpush.bf16.msra.mxu0 %v690
    %917 = vmatpush.bf16.msra.mxu0 %v682
    %918 = vmatpush.bf16.msra.mxu0 %v674
    %919 = vmatpush.bf16.msra.mxu0 %v666
    %920 = vmatpush.bf16.msra.mxu0 %v658
    %921 = vmatmul.bf16.gmra.mxu0 %v205
    %v922 = vpop.f32.mrf.mxu0
    %v923 = vadd.f32 %v910, %v922
    %v924 = vpop.f32.mrf.mxu0
    %925 = vdwg.mxu0
    %926 = vmatpush.bf16.msra.mxu0 %v651
    %927 = vmatpush.bf16.msra.mxu0 %v643
    %928 = vmatpush.bf16.msra.mxu0 %v635
    %929 = vmatpush.bf16.msra.mxu0 %v627
    %930 = vmatpush.bf16.msra.mxu0 %v619
    %931 = vmatpush.bf16.msra.mxu0 %v611
    %932 = vmatpush.bf16.msra.mxu0 %v603
    %933 = vmatpush.bf16.msra.mxu0 %v595
    %934 = vmatmul.bf16.gmra.mxu0 %v204
    %v935 = vpop.f32.mrf.mxu0
    %v936 = vadd.f32 %v188, %v935
    %v937 = vpop.f32.mrf.mxu0
    %938 = vdwg.mxu0
    %939 = vmatpush.bf16.msra.mxu0 %v715
    %940 = vmatpush.bf16.msra.mxu0 %v707
    %941 = vmatpush.bf16.msra.mxu0 %v699
    %942 = vmatpush.bf16.msra.mxu0 %v691
    %943 = vmatpush.bf16.msra.mxu0 %v683
    %944 = vmatpush.bf16.msra.mxu0 %v675
    %945 = vmatpush.bf16.msra.mxu0 %v667
    %946 = vmatpush.bf16.msra.mxu0 %v659
    %947 = vmatmul.bf16.gmra.mxu0 %v205
    %v948 = vpop.f32.mrf.mxu0
    %v949 = vadd.f32 %v936, %v948
    %v950 = vpop.f32.mrf.mxu0
    %951 = vdwg.mxu0
    %952 = vmatpush.bf16.msra.mxu0 %v652
    %953 = vmatpush.bf16.msra.mxu0 %v644
    %954 = vmatpush.bf16.msra.mxu0 %v636
    %955 = vmatpush.bf16.msra.mxu0 %v628
    %956 = vmatpush.bf16.msra.mxu0 %v620
    %957 = vmatpush.bf16.msra.mxu0 %v612
    %958 = vmatpush.bf16.msra.mxu0 %v604
    %959 = vmatpush.bf16.msra.mxu0 %v596
    %960 = vmatmul.bf16.gmra.mxu0 %v204
    %v961 = vpop.f32.mrf.mxu0
    %v962 = vadd.f32 %v189, %v961
    %v963 = vpop.f32.mrf.mxu0
    %964 = vdwg.mxu0
    %965 = vmatpush.bf16.msra.mxu0 %v716
    %966 = vmatpush.bf16.msra.mxu0 %v708
    %967 = vmatpush.bf16.msra.mxu0 %v700
    %968 = vmatpush.bf16.msra.mxu0 %v692
    %969 = vmatpush.bf16.msra.mxu0 %v684
    %970 = vmatpush.bf16.msra.mxu0 %v676
    %971 = vmatpush.bf16.msra.mxu0 %v668
    %972 = vmatpush.bf16.msra.mxu0 %v660
    %973 = vmatmul.bf16.gmra.mxu0 %v205
    %v974 = vpop.f32.mrf.mxu0
    %v975 = vadd.f32 %v962, %v974
    %v976 = vpop.f32.mrf.mxu0
    %977 = vdwg.mxu0
    %978 = vmatpush.bf16.msra.mxu0 %v653
    %979 = vmatpush.bf16.msra.mxu0 %v645
    %980 = vmatpush.bf16.msra.mxu0 %v637
    %981 = vmatpush.bf16.msra.mxu0 %v629
    %982 = vmatpush.bf16.msra.mxu0 %v621
    %983 = vmatpush.bf16.msra.mxu0 %v613
    %984 = vmatpush.bf16.msra.mxu0 %v605
    %985 = vmatpush.bf16.msra.mxu0 %v597
    %986 = vmatmul.bf16.gmra.mxu0 %v204
    %v987 = vpop.f32.mrf.mxu0
    %v988 = vadd.f32 %v190, %v987
    %v989 = vpop.f32.mrf.mxu0
    %990 = vdwg.mxu0
    %991 = vmatpush.bf16.msra.mxu0 %v717
    %992 = vmatpush.bf16.msra.mxu0 %v709
    %993 = vmatpush.bf16.msra.mxu0 %v701
    %994 = vmatpush.bf16.msra.mxu0 %v693
    %995 = vmatpush.bf16.msra.mxu0 %v685
    %996 = vmatpush.bf16.msra.mxu0 %v677
    %997 = vmatpush.bf16.msra.mxu0 %v669
    %998 = vmatpush.bf16.msra.mxu0 %v661
    %999 = vmatmul.bf16.gmra.mxu0 %v205
    %v1000 = vpop.f32.mrf.mxu0
    %v1001 = vadd.f32 %v988, %v1000
    %v1002 = vpop.f32.mrf.mxu0
    %1003 = vdwg.mxu0
    %1004 = vmatpush.bf16.msra.mxu0 %v654
    %1005 = vmatpush.bf16.msra.mxu0 %v646
    %1006 = vmatpush.bf16.msra.mxu0 %v638
    %1007 = vmatpush.bf16.msra.mxu0 %v630
    %1008 = vmatpush.bf16.msra.mxu0 %v622
    %1009 = vmatpush.bf16.msra.mxu0 %v614
    %1010 = vmatpush.bf16.msra.mxu0 %v606
    %1011 = vmatpush.bf16.msra.mxu0 %v598
    %1012 = vmatmul.bf16.gmra.mxu0 %v204
    %v1013 = vpop.f32.mrf.mxu0
    %v1014 = vadd.f32 %v191, %v1013
    %v1015 = vpop.f32.mrf.mxu0
    %1016 = vdwg.mxu0
    %1017 = vmatpush.bf16.msra.mxu0 %v718
    %1018 = vmatpush.bf16.msra.mxu0 %v710
    %1019 = vmatpush.bf16.msra.mxu0 %v702
    %1020 = vmatpush.bf16.msra.mxu0 %v694
    %1021 = vmatpush.bf16.msra.mxu0 %v686
    %1022 = vmatpush.bf16.msra.mxu0 %v678
    %1023 = vmatpush.bf16.msra.mxu0 %v670
    %1024 = vmatpush.bf16.msra.mxu0 %v662
    %1025 = vmatmul.bf16.gmra.mxu0 %v205
    %v1026 = vpop.f32.mrf.mxu0
    %v1027 = vadd.f32 %v1014, %v1026
    %v1028 = vpop.f32.mrf.mxu0
    %1029 = vdwg.mxu0
    %1030 = vmatpush.bf16.msra.mxu0 %v655
    %1031 = vmatpush.bf16.msra.mxu0 %v647
    %1032 = vmatpush.bf16.msra.mxu0 %v639
    %1033 = vmatpush.bf16.msra.mxu0 %v631
    %1034 = vmatpush.bf16.msra.mxu0 %v623
    %1035 = vmatpush.bf16.msra.mxu0 %v615
    %1036 = vmatpush.bf16.msra.mxu0 %v607
    %1037 = vmatpush.bf16.msra.mxu0 %v599
    %1038 = vmatmul.bf16.gmra.mxu0 %v204
    %v1039 = vpop.f32.mrf.mxu0
    %v1040 = vadd.f32 %v192, %v1039
    %v1041 = vpop.f32.mrf.mxu0
    %1042 = vdwg.mxu0
    %1043 = vmatpush.bf16.msra.mxu0 %v719
    %1044 = vmatpush.bf16.msra.mxu0 %v711
    %1045 = vmatpush.bf16.msra.mxu0 %v703
    %1046 = vmatpush.bf16.msra.mxu0 %v695
    %1047 = vmatpush.bf16.msra.mxu0 %v687
    %1048 = vmatpush.bf16.msra.mxu0 %v679
    %1049 = vmatpush.bf16.msra.mxu0 %v671
    %1050 = vmatpush.bf16.msra.mxu0 %v663
    %1051 = vmatmul.bf16.gmra.mxu0 %v205
    %v1052 = vpop.f32.mrf.mxu0
    %v1053 = vadd.f32 %v1040, %v1052
    %v1054 = vpop.f32.mrf.mxu0
    %1055 = vdwg.mxu0
    %s1056 = sld [smem:[#allocation2]]
    %vm1057 = vcmp.ge.f32.partialorder %v871, 0.0
    %vm1058 = vcmp.ge.f32.partialorder %v897, 0.0
    %vm1059 = vcmp.ge.f32.partialorder %v923, 0.0
    %vm1060 = vcmp.ge.f32.partialorder %v949, 0.0
    %vm1061 = vcmp.ge.f32.partialorder %v975, 0.0
    %vm1062 = vcmp.ge.f32.partialorder %v1001, 0.0
    %vm1063 = vcmp.ge.f32.partialorder %v1027, 0.0
    %vm1064 = vcmp.ge.f32.partialorder %v1053, 0.0
    %v1065 = vstv %s1056
    %v1066 = vmul.f32 %v1065, %v871
    %v1067 = vmul.f32 %v1065, %v897
    %v1068 = vmul.f32 %v1065, %v923
    %v1069 = vmul.f32 %v1065, %v949
    %v1070 = vmul.f32 %v1065, %v975
    %v1071 = vmul.f32 %v1065, %v1001
    %v1072 = vmul.f32 %v1065, %v1027
    %v1073 = vmul.f32 %v1065, %v1053
    %v1074 = vsel %vm1057, %v871, %v1066
    %v1075 = vsel %vm1058, %v897, %v1067
    %v1076 = vsel %vm1059, %v923, %v1068
    %v1077 = vsel %vm1060, %v949, %v1069
    %v1078 = vsel %vm1061, %v975, %v1070
    %v1079 = vsel %vm1062, %v1001, %v1071
    %v1080 = vsel %vm1063, %v1027, %v1072
    %v1081 = vsel %vm1064, %v1053, %v1073
    %v1082 = vld [vmem:[%s7] sm:$0xff]
    %v1083 = vld [vmem:[%s7 + $0x8] sm:$0xff]
    %v1084 = vld [vmem:[%s7 + $0x10] sm:$0xff]
    %v1085 = vld [vmem:[%s7 + $0x18] sm:$0xff]
    %v1086 = vld [vmem:[%s7 + $0x20] sm:$0xff]
    %v1087 = vld [vmem:[%s7 + $0x28] sm:$0xff]
    %v1088 = vld [vmem:[%s7 + $0x30] sm:$0xff]
    %v1089 = vld [vmem:[%s7 + $0x38] sm:$0xff]
    %v1090 = vld [vmem:[%s7 + $0x40] sm:$0xff]
    %v1091 = vld [vmem:[%s7 + $0x48] sm:$0xff]
    %v1092 = vld [vmem:[%s7 + $0x50] sm:$0xff]
    %v1093 = vld [vmem:[%s7 + $0x58] sm:$0xff]
    %v1094 = vld [vmem:[%s7 + $0x60] sm:$0xff]
    %v1095 = vld [vmem:[%s7 + $0x68] sm:$0xff]
    %v1096 = vld [vmem:[%s7 + $0x70] sm:$0xff]
    %v1097 = vld [vmem:[%s7 + $0x78] sm:$0xff]
    %v1098 = vld [vmem:[%s7 + $0x80] sm:$0xff]
    %v1099 = vld [vmem:[%s7 + $0x88] sm:$0xff]
    %v1100 = vld [vmem:[%s7 + $0x90] sm:$0xff]
    %v1101 = vld [vmem:[%s7 + $0x98] sm:$0xff]
    %v1102 = vld [vmem:[%s7 + $0xa0] sm:$0xff]
    %v1103 = vld [vmem:[%s7 + $0xa8] sm:$0xff]
    %v1104 = vld [vmem:[%s7 + $0xb0] sm:$0xff]
    %v1105 = vld [vmem:[%s7 + $0xb8] sm:$0xff]
    %v1106 = vld [vmem:[%s7 + $0xc0] sm:$0xff]
    %v1107 = vld [vmem:[%s7 + $0xc8] sm:$0xff]
    %v1108 = vld [vmem:[%s7 + $0xd0] sm:$0xff]
    %v1109 = vld [vmem:[%s7 + $0xd8] sm:$0xff]
    %v1110 = vld [vmem:[%s7 + $0xe0] sm:$0xff]
    %v1111 = vld [vmem:[%s7 + $0xe8] sm:$0xff]
    %v1112 = vld [vmem:[%s7 + $0xf0] sm:$0xff]
    %v1113 = vld [vmem:[%s7 + $0xf8] sm:$0xff]
    %v1114 = vld [vmem:[%s7 + $0x100] sm:$0xff]
    %v1115 = vld [vmem:[%s7 + $0x108] sm:$0xff]
    %v1116 = vld [vmem:[%s7 + $0x110] sm:$0xff]
    %v1117 = vld [vmem:[%s7 + $0x118] sm:$0xff]
    %v1118 = vld [vmem:[%s7 + $0x120] sm:$0xff]
    %v1119 = vld [vmem:[%s7 + $0x128] sm:$0xff]
    %v1120 = vld [vmem:[%s7 + $0x130] sm:$0xff]
    %v1121 = vld [vmem:[%s7 + $0x138] sm:$0xff]
    %v1122 = vld [vmem:[%s7 + $0x140] sm:$0xff]
    %v1123 = vld [vmem:[%s7 + $0x148] sm:$0xff]
    %v1124 = vld [vmem:[%s7 + $0x150] sm:$0xff]
    %v1125 = vld [vmem:[%s7 + $0x158] sm:$0xff]
    %v1126 = vld [vmem:[%s7 + $0x160] sm:$0xff]
    %v1127 = vld [vmem:[%s7 + $0x168] sm:$0xff]
    %v1128 = vld [vmem:[%s7 + $0x170] sm:$0xff]
    %v1129 = vld [vmem:[%s7 + $0x178] sm:$0xff]
    %v1130 = vld [vmem:[%s7 + $0x180] sm:$0xff]
    %v1131 = vld [vmem:[%s7 + $0x188] sm:$0xff]
    %v1132 = vld [vmem:[%s7 + $0x190] sm:$0xff]
    %v1133 = vld [vmem:[%s7 + $0x198] sm:$0xff]
    %v1134 = vld [vmem:[%s7 + $0x1a0] sm:$0xff]
    %v1135 = vld [vmem:[%s7 + $0x1a8] sm:$0xff]
    %v1136 = vld [vmem:[%s7 + $0x1b0] sm:$0xff]
    %v1137 = vld [vmem:[%s7 + $0x1b8] sm:$0xff]
    %v1138 = vld [vmem:[%s7 + $0x1c0] sm:$0xff]
    %v1139 = vld [vmem:[%s7 + $0x1c8] sm:$0xff]
    %v1140 = vld [vmem:[%s7 + $0x1d0] sm:$0xff]
    %v1141 = vld [vmem:[%s7 + $0x1d8] sm:$0xff]
    %v1142 = vld [vmem:[%s7 + $0x1e0] sm:$0xff]
    %v1143 = vld [vmem:[%s7 + $0x1e8] sm:$0xff]
    %v1144 = vld [vmem:[%s7 + $0x1f0] sm:$0xff]
    %v1145 = vld [vmem:[%s7 + $0x1f8] sm:$0xff]
    %v1146 = vld [vmem:[%s7 + $0x200] sm:$0xff]
    %v1147 = vld [vmem:[%s7 + $0x208] sm:$0xff]
    %v1148 = vld [vmem:[%s7 + $0x210] sm:$0xff]
    %v1149 = vld [vmem:[%s7 + $0x218] sm:$0xff]
    %v1150 = vld [vmem:[%s7 + $0x220] sm:$0xff]
    %v1151 = vld [vmem:[%s7 + $0x228] sm:$0xff]
    %v1152 = vld [vmem:[%s7 + $0x230] sm:$0xff]
    %v1153 = vld [vmem:[%s7 + $0x238] sm:$0xff]
    %v1154 = vld [vmem:[%s7 + $0x240] sm:$0xff]
    %v1155 = vld [vmem:[%s7 + $0x248] sm:$0xff]
    %v1156 = vld [vmem:[%s7 + $0x250] sm:$0xff]
    %v1157 = vld [vmem:[%s7 + $0x258] sm:$0xff]
    %v1158 = vld [vmem:[%s7 + $0x260] sm:$0xff]
    %v1159 = vld [vmem:[%s7 + $0x268] sm:$0xff]
    %v1160 = vld [vmem:[%s7 + $0x270] sm:$0xff]
    %v1161 = vld [vmem:[%s7 + $0x278] sm:$0xff]
    %v1162 = vld [vmem:[%s7 + $0x280] sm:$0xff]
    %v1163 = vld [vmem:[%s7 + $0x288] sm:$0xff]
    %v1164 = vld [vmem:[%s7 + $0x290] sm:$0xff]
    %v1165 = vld [vmem:[%s7 + $0x298] sm:$0xff]
    %v1166 = vld [vmem:[%s7 + $0x2a0] sm:$0xff]
    %v1167 = vld [vmem:[%s7 + $0x2a8] sm:$0xff]
    %v1168 = vld [vmem:[%s7 + $0x2b0] sm:$0xff]
    %v1169 = vld [vmem:[%s7 + $0x2b8] sm:$0xff]
    %v1170 = vld [vmem:[%s7 + $0x2c0] sm:$0xff]
    %v1171 = vld [vmem:[%s7 + $0x2c8] sm:$0xff]
    %v1172 = vld [vmem:[%s7 + $0x2d0] sm:$0xff]
    %v1173 = vld [vmem:[%s7 + $0x2d8] sm:$0xff]
    %v1174 = vld [vmem:[%s7 + $0x2e0] sm:$0xff]
    %v1175 = vld [vmem:[%s7 + $0x2e8] sm:$0xff]
    %v1176 = vld [vmem:[%s7 + $0x2f0] sm:$0xff]
    %v1177 = vld [vmem:[%s7 + $0x2f8] sm:$0xff]
    %v1178 = vld [vmem:[%s7 + $0x300] sm:$0xff]
    %v1179 = vld [vmem:[%s7 + $0x308] sm:$0xff]
    %v1180 = vld [vmem:[%s7 + $0x310] sm:$0xff]
    %v1181 = vld [vmem:[%s7 + $0x318] sm:$0xff]
    %v1182 = vld [vmem:[%s7 + $0x320] sm:$0xff]
    %v1183 = vld [vmem:[%s7 + $0x328] sm:$0xff]
    %v1184 = vld [vmem:[%s7 + $0x330] sm:$0xff]
    %v1185 = vld [vmem:[%s7 + $0x338] sm:$0xff]
    %v1186 = vld [vmem:[%s7 + $0x340] sm:$0xff]
    %v1187 = vld [vmem:[%s7 + $0x348] sm:$0xff]
    %v1188 = vld [vmem:[%s7 + $0x350] sm:$0xff]
    %v1189 = vld [vmem:[%s7 + $0x358] sm:$0xff]
    %v1190 = vld [vmem:[%s7 + $0x360] sm:$0xff]
    %v1191 = vld [vmem:[%s7 + $0x368] sm:$0xff]
    %v1192 = vld [vmem:[%s7 + $0x370] sm:$0xff]
    %v1193 = vld [vmem:[%s7 + $0x378] sm:$0xff]
    %v1194 = vld [vmem:[%s7 + $0x380] sm:$0xff]
    %v1195 = vld [vmem:[%s7 + $0x388] sm:$0xff]
    %v1196 = vld [vmem:[%s7 + $0x390] sm:$0xff]
    %v1197 = vld [vmem:[%s7 + $0x398] sm:$0xff]
    %v1198 = vld [vmem:[%s7 + $0x3a0] sm:$0xff]
    %v1199 = vld [vmem:[%s7 + $0x3a8] sm:$0xff]
    %v1200 = vld [vmem:[%s7 + $0x3b0] sm:$0xff]
    %v1201 = vld [vmem:[%s7 + $0x3b8] sm:$0xff]
    %v1202 = vld [vmem:[%s7 + $0x3c0] sm:$0xff]
    %v1203 = vld [vmem:[%s7 + $0x3c8] sm:$0xff]
    %v1204 = vld [vmem:[%s7 + $0x3d0] sm:$0xff]
    %v1205 = vld [vmem:[%s7 + $0x3d8] sm:$0xff]
    %v1206 = vld [vmem:[%s7 + $0x3e0] sm:$0xff]
    %v1207 = vld [vmem:[%s7 + $0x3e8] sm:$0xff]
    %v1208 = vld [vmem:[%s7 + $0x3f0] sm:$0xff]
    %v1209 = vld [vmem:[%s7 + $0x3f8] sm:$0xff]
    %v1210 = vld [vmem:[%s4] sm:$0x1]
    %v1211 = vperm.slane %v1210, 0
    %1212 = vmatpush.msra.mxu0 %v1097
    %1213 = vmatpush.msra.mxu0 %v1096
    %1214 = vmatpush.msra.mxu0 %v1095
    %1215 = vmatpush.msra.mxu0 %v1094
    %1216 = vmatpush.msra.mxu0 %v1093
    %1217 = vmatpush.msra.mxu0 %v1092
    %1218 = vmatpush.msra.mxu0 %v1091
    %1219 = vmatpush.msra.mxu0 %v1090
    %1220 = vmatpush.msra.mxu0 %v1089
    %1221 = vmatpush.msra.mxu0 %v1088
    %1222 = vmatpush.msra.mxu0 %v1087
    %1223 = vmatpush.msra.mxu0 %v1086
    %1224 = vmatpush.msra.mxu0 %v1085
    %1225 = vmatpush.msra.mxu0 %v1084
    %1226 = vmatpush.msra.mxu0 %v1083
    %1227 = vmatpush.msra.mxu0 %v1082
    %1228 = vmatmul.f32.gmra.mxu0 %v1074
    %v1229 = vpop.f32.mrf.mxu0
    %v1230 = vadd.f32 %v1211, %v1229
    %1231 = vdwg.mxu0
    %1232 = vmatpush.msra.mxu0 %v1113
    %1233 = vmatpush.msra.mxu0 %v1112
    %1234 = vmatpush.msra.mxu0 %v1111
    %1235 = vmatpush.msra.mxu0 %v1110
    %1236 = vmatpush.msra.mxu0 %v1109
    %1237 = vmatpush.msra.mxu0 %v1108
    %1238 = vmatpush.msra.mxu0 %v1107
    %1239 = vmatpush.msra.mxu0 %v1106
    %1240 = vmatpush.msra.mxu0 %v1105
    %1241 = vmatpush.msra.mxu0 %v1104
    %1242 = vmatpush.msra.mxu0 %v1103
    %1243 = vmatpush.msra.mxu0 %v1102
    %1244 = vmatpush.msra.mxu0 %v1101
    %1245 = vmatpush.msra.mxu0 %v1100
    %1246 = vmatpush.msra.mxu0 %v1099
    %1247 = vmatpush.msra.mxu0 %v1098
    %1248 = vmatmul.f32.gmra.mxu0 %v1075
    %v1249 = vpop.f32.mrf.mxu0
    %v1250 = vadd.f32 %v1230, %v1249
    %1251 = vdwg.mxu0
    %1252 = vmatpush.msra.mxu0 %v1129
    %1253 = vmatpush.msra.mxu0 %v1128
    %1254 = vmatpush.msra.mxu0 %v1127
    %1255 = vmatpush.msra.mxu0 %v1126
    %1256 = vmatpush.msra.mxu0 %v1125
    %1257 = vmatpush.msra.mxu0 %v1124
    %1258 = vmatpush.msra.mxu0 %v1123
    %1259 = vmatpush.msra.mxu0 %v1122
    %1260 = vmatpush.msra.mxu0 %v1121
    %1261 = vmatpush.msra.mxu0 %v1120
    %1262 = vmatpush.msra.mxu0 %v1119
    %1263 = vmatpush.msra.mxu0 %v1118
    %1264 = vmatpush.msra.mxu0 %v1117
    %1265 = vmatpush.msra.mxu0 %v1116
    %1266 = vmatpush.msra.mxu0 %v1115
    %1267 = vmatpush.msra.mxu0 %v1114
    %1268 = vmatmul.f32.gmra.mxu0 %v1076
    %v1269 = vpop.f32.mrf.mxu0
    %v1270 = vadd.f32 %v1250, %v1269
    %1271 = vdwg.mxu0
    %1272 = vmatpush.msra.mxu0 %v1145
    %1273 = vmatpush.msra.mxu0 %v1144
    %1274 = vmatpush.msra.mxu0 %v1143
    %1275 = vmatpush.msra.mxu0 %v1142
    %1276 = vmatpush.msra.mxu0 %v1141
    %1277 = vmatpush.msra.mxu0 %v1140
    %1278 = vmatpush.msra.mxu0 %v1139
    %1279 = vmatpush.msra.mxu0 %v1138
    %1280 = vmatpush.msra.mxu0 %v1137
    %1281 = vmatpush.msra.mxu0 %v1136
    %1282 = vmatpush.msra.mxu0 %v1135
    %1283 = vmatpush.msra.mxu0 %v1134
    %1284 = vmatpush.msra.mxu0 %v1133
    %1285 = vmatpush.msra.mxu0 %v1132
    %1286 = vmatpush.msra.mxu0 %v1131
    %1287 = vmatpush.msra.mxu0 %v1130
    %1288 = vmatmul.f32.gmra.mxu0 %v1077
    %v1289 = vpop.f32.mrf.mxu0
    %v1290 = vadd.f32 %v1270, %v1289
    %1291 = vdwg.mxu0
    %1292 = vmatpush.msra.mxu0 %v1161
    %1293 = vmatpush.msra.mxu0 %v1160
    %1294 = vmatpush.msra.mxu0 %v1159
    %1295 = vmatpush.msra.mxu0 %v1158
    %1296 = vmatpush.msra.mxu0 %v1157
    %1297 = vmatpush.msra.mxu0 %v1156
    %1298 = vmatpush.msra.mxu0 %v1155
    %1299 = vmatpush.msra.mxu0 %v1154
    %1300 = vmatpush.msra.mxu0 %v1153
    %1301 = vmatpush.msra.mxu0 %v1152
    %1302 = vmatpush.msra.mxu0 %v1151
    %1303 = vmatpush.msra.mxu0 %v1150
    %1304 = vmatpush.msra.mxu0 %v1149
    %1305 = vmatpush.msra.mxu0 %v1148
    %1306 = vmatpush.msra.mxu0 %v1147
    %1307 = vmatpush.msra.mxu0 %v1146
    %1308 = vmatmul.f32.gmra.mxu0 %v1078
    %v1309 = vpop.f32.mrf.mxu0
    %v1310 = vadd.f32 %v1290, %v1309
    %1311 = vdwg.mxu0
    %1312 = vmatpush.msra.mxu0 %v1177
    %1313 = vmatpush.msra.mxu0 %v1176
    %1314 = vmatpush.msra.mxu0 %v1175
    %1315 = vmatpush.msra.mxu0 %v1174
    %1316 = vmatpush.msra.mxu0 %v1173
    %1317 = vmatpush.msra.mxu0 %v1172
    %1318 = vmatpush.msra.mxu0 %v1171
    %1319 = vmatpush.msra.mxu0 %v1170
    %1320 = vmatpush.msra.mxu0 %v1169
    %1321 = vmatpush.msra.mxu0 %v1168
    %1322 = vmatpush.msra.mxu0 %v1167
    %1323 = vmatpush.msra.mxu0 %v1166
    %1324 = vmatpush.msra.mxu0 %v1165
    %1325 = vmatpush.msra.mxu0 %v1164
    %1326 = vmatpush.msra.mxu0 %v1163
    %1327 = vmatpush.msra.mxu0 %v1162
    %1328 = vmatmul.f32.gmra.mxu0 %v1079
    %v1329 = vpop.f32.mrf.mxu0
    %v1330 = vadd.f32 %v1310, %v1329
    %1331 = vdwg.mxu0
    %1332 = vmatpush.msra.mxu0 %v1193
    %1333 = vmatpush.msra.mxu0 %v1192
    %1334 = vmatpush.msra.mxu0 %v1191
    %1335 = vmatpush.msra.mxu0 %v1190
    %1336 = vmatpush.msra.mxu0 %v1189
    %1337 = vmatpush.msra.mxu0 %v1188
    %1338 = vmatpush.msra.mxu0 %v1187
    %1339 = vmatpush.msra.mxu0 %v1186
    %1340 = vmatpush.msra.mxu0 %v1185
    %1341 = vmatpush.msra.mxu0 %v1184
    %1342 = vmatpush.msra.mxu0 %v1183
    %1343 = vmatpush.msra.mxu0 %v1182
    %1344 = vmatpush.msra.mxu0 %v1181
    %1345 = vmatpush.msra.mxu0 %v1180
    %1346 = vmatpush.msra.mxu0 %v1179
    %1347 = vmatpush.msra.mxu0 %v1178
    %1348 = vmatmul.f32.gmra.mxu0 %v1080
    %v1349 = vpop.f32.mrf.mxu0
    %v1350 = vadd.f32 %v1330, %v1349
    %1351 = vdwg.mxu0
    %1352 = vmatpush.msra.mxu0 %v1209
    %1353 = vmatpush.msra.mxu0 %v1208
    %1354 = vmatpush.msra.mxu0 %v1207
    %1355 = vmatpush.msra.mxu0 %v1206
    %1356 = vmatpush.msra.mxu0 %v1205
    %1357 = vmatpush.msra.mxu0 %v1204
    %1358 = vmatpush.msra.mxu0 %v1203
    %1359 = vmatpush.msra.mxu0 %v1202
    %1360 = vmatpush.msra.mxu0 %v1201
    %1361 = vmatpush.msra.mxu0 %v1200
    %1362 = vmatpush.msra.mxu0 %v1199
    %1363 = vmatpush.msra.mxu0 %v1198
    %1364 = vmatpush.msra.mxu0 %v1197
    %1365 = vmatpush.msra.mxu0 %v1196
    %1366 = vmatpush.msra.mxu0 %v1195
    %1367 = vmatpush.msra.mxu0 %v1194
    %1368 = vmatmul.f32.gmra.mxu0 %v1081
    %v1369 = vpop.f32.mrf.mxu0
    %v1370 = vadd.f32 %v1350, %v1369
    %1371 = vdwg.mxu0
    %s1372 = sld [smem:[#allocation2 + $0x1]]
    %vm1373 = vcmp.ge.f32.partialorder %v1370, 0.0
    %v1374 = vstv %s1372
    %v1375 = vmul.f32 %v1374, %v1370
    %v1376 = vsel %vm1373, %v1370, %v1375
    %v1377 = vld [vmem:[%s1] sm:$0xff]
    %v1378 = vld [vmem:[%s1 + $0x8] sm:$0xff]
    %v1379 = vld [vmem:[%s1 + $0x10] sm:$0xff]
    %v1380 = vld [vmem:[%s1 + $0x18] sm:$0xff]
    %v1381 = vld [vmem:[%s1 + $0x20] sm:$0xff]
    %v1382 = vld [vmem:[%s8] sm:$0xff]
    %vm1383 = vcmask 64512
    %v1385 = vsel %vm1383, %v1377, 0
    %v1388 = vsel %vm1383, %v1378, 0
    %v1391 = vsel %vm1383, %v1379, 0
    %v1394 = vsel %vm1383, %v1380, 0
    %v1397 = vsel %vm1383, %v1381, 0
    %1399 = vmatpush.msra.mxu0 0.0
    %1400 = vmatpush.msra.mxu0 0.0
    %1401 = vmatpush.msra.mxu0 0.0
    %1402 = vmatpush.msra.mxu0 0.0
    %1403 = vmatpush.msra.mxu0 0.0
    %1404 = vmatpush.msra.mxu0 0.0
    %1405 = vmatpush.msra.mxu0 0.0
    %1406 = vmatpush.msra.mxu0 0.0
    %1407 = vmatpush.msra.mxu0 0.0
    %1408 = vmatpush.msra.mxu0 0.0
    %1409 = vmatpush.msra.mxu0 0.0
    %1410 = vmatpush.msra.mxu0 0.0
    %1411 = vmatpush.msra.mxu0 0.0
    %1412 = vmatpush.msra.mxu0 0.0
    %1413 = vmatpush.msra.mxu0 0.0
    %1414 = vmatpush.msra.mxu0 %v1382
    %1415 = vmatmul.f32.gmra.mxu0 %v1385
    %v1416 = vpop.f32.mrf.mxu0
    %v1417 = vadd.f32 0.0, %v1416
    %1418 = vmatmul.f32.gmra.mxu0 %v1388
    %v1419 = vpop.f32.mrf.mxu0
    %v1420 = vadd.f32 0.0, %v1419
    %1421 = vmatmul.f32.gmra.mxu0 %v1391
    %v1422 = vpop.f32.mrf.mxu0
    %v1423 = vadd.f32 0.0, %v1422
    %1424 = vmatmul.f32.gmra.mxu0 %v1394
    %v1425 = vpop.f32.mrf.mxu0
    %v1426 = vadd.f32 0.0, %v1425
    %1427 = vmatmul.f32.gmra.mxu0 %v1397
    %v1428 = vpop.f32.mrf.mxu0
    %v1429 = vadd.f32 0.0, %v1428
    %1430 = vdwg.mxu0
    %v1431 = vld [vmem:[%s4 + $0x1] sm:$0x1]
    %v1432 = vld [vmem:[%s9] sm:$0xff]
    %v1433 = vld [vmem:[%s9 + $0x8] sm:$0xff]
    %v1434 = vperm.slane %v1431, 0
    %vm1435 = vcmask 130048
    %v1437 = vsel %vm1435, 0.0, 0
    %1439 = vmatpush.msra.mxu0 0.0
    %1440 = vmatpush.msra.mxu0 0.0
    %1441 = vmatpush.msra.mxu0 0.0
    %1442 = vmatpush.msra.mxu0 0.0
    %1443 = vmatpush.msra.mxu0 0.0
    %1444 = vmatpush.msra.mxu0 0.0
    %1445 = vmatpush.msra.mxu0 0.0
    %1446 = vmatpush.msra.mxu0 0.0
    %1447 = vmatpush.msra.mxu0 0.0
    %1448 = vmatpush.msra.mxu0 0.0
    %1449 = vmatpush.msra.mxu0 0.0
    %1450 = vmatpush.msra.mxu0 0.0
    %1451 = vmatpush.msra.mxu0 0.0
    %1452 = vmatpush.msra.mxu0 0.0
    %1453 = vmatpush.msra.mxu0 %v1433
    %1454 = vmatpush.msra.mxu0 %v1432
    %1455 = vmatmul.f32.gmra.mxu0 %v1437
    %v1456 = vpop.f32.mrf.mxu0
    %v1457 = vadd.f32 %v1434, %v1456
    %1458 = vdwg.mxu0
    %v1459 = vadd.f32 %v1417, %v1457
    %v1460 = vxor.u32 %v1459, 2147483648
    %v1461 = vmul.f32 %v1460, 1.442695
    %v1462 = vpow.pop %v1461
    %v1463 = vadd.f32 %v1462, 1.0
    %v1464 = vrcp.pop %v1463
    %v1465 = vmul.f32 %v1463, %v1464
    %v1466 = vsub.f32 1.0, %v1465
    %v1467 = vmul.f32 %v1464, %v1466
    %v1468 = vadd.f32 %v1464, %v1467
    %vm1469 = vweird.f32 %v1463
    %vm1470 = vweird.f32 %v1464
    %vm1471 = vmor %vm1469, %vm1470
    %v1472 = vsel %vm1471, %v1464, %v1468
    %v1473 = vand.u32 2147483647, %v1463
    %vm1474 = vcmp.eq.f32.partialorder %v1473, 8.507059e+37
    %v1475 = vand.u32 %v1463, 2147483648
    %v1476 = vor.u32 1.1754944e-38, %v1475
    %v1477 = vsel %vm1474, %v1476, %v1472
    %v1478 = vmul.f32 1.0, %v1477
    %1480 = vrot.lane.b32.xlu0 %v1457, 96
    %v1481 = vpop.permute.xlu0 %1480
    %v1483 = vmul.f32 %v1478, %v1481
    %1485 = vrot.lane.b32.xlu0 %v1483, 32
    %v1486 = vpop.permute.xlu0 %1485
    %v1488 = vadd.f32 %v1417, %v1486
    %v1489 = vtanh.pop %v1488
    %v1490 = vsub.f32 1.0, %v1478
    %1492 = vrot.lane.b32.xlu0 %v1489, 112
    %v1493 = vpop.permute.xlu0 %1492
    %v1495 = vmul.f32 %v1490, %v1493
    %v1496 = vmul.f32 %v1478, 0.0
    %v1497 = vadd.f32 %v1495, %v1496
    %1499 = vrot.lane.b32.xlu0 %v1497, 112
    %v1500 = vpop.permute.xlu0 %1499
    %v1501 = vsel %vm1435, %v1500, 0
    %1503 = vmatpush.msra.mxu0 0.0
    %1504 = vmatpush.msra.mxu0 0.0
    %1505 = vmatpush.msra.mxu0 0.0
    %1506 = vmatpush.msra.mxu0 0.0
    %1507 = vmatpush.msra.mxu0 0.0
    %1508 = vmatpush.msra.mxu0 0.0
    %1509 = vmatpush.msra.mxu0 0.0
    %1510 = vmatpush.msra.mxu0 0.0
    %1511 = vmatpush.msra.mxu0 0.0
    %1512 = vmatpush.msra.mxu0 0.0
    %1513 = vmatpush.msra.mxu0 0.0
    %1514 = vmatpush.msra.mxu0 0.0
    %1515 = vmatpush.msra.mxu0 0.0
    %1516 = vmatpush.msra.mxu0 0.0
    %1517 = vmatpush.msra.mxu0 %v1433
    %1518 = vmatpush.msra.mxu0 %v1432
    %1519 = vmatmul.f32.gmra.mxu0 %v1501
    %v1520 = vpop.f32.mrf.mxu0
    %v1521 = vadd.f32 %v1434, %v1520
    %1522 = vdwg.mxu0
    %v1523 = vadd.f32 %v1420, %v1521
    %v1524 = vxor.u32 %v1523, 2147483648
    %v1525 = vmul.f32 %v1524, 1.442695
    %v1526 = vpow.pop %v1525
    %v1527 = vadd.f32 %v1526, 1.0
    %v1528 = vrcp.pop %v1527
    %v1529 = vmul.f32 %v1527, %v1528
    %v1530 = vsub.f32 1.0, %v1529
    %v1531 = vmul.f32 %v1528, %v1530
    %v1532 = vadd.f32 %v1528, %v1531
    %vm1533 = vweird.f32 %v1527
    %vm1534 = vweird.f32 %v1528
    %vm1535 = vmor %vm1533, %vm1534
    %v1536 = vsel %vm1535, %v1528, %v1532
    %v1537 = vand.u32 2147483647, %v1527
    %vm1538 = vcmp.eq.f32.partialorder %v1537, 8.507059e+37
    %v1539 = vand.u32 %v1527, 2147483648
    %v1540 = vor.u32 1.1754944e-38, %v1539
    %v1541 = vsel %vm1538, %v1540, %v1536
    %v1542 = vmul.f32 1.0, %v1541
    %1544 = vrot.lane.b32.xlu0 %v1521, 96
    %v1545 = vpop.permute.xlu0 %1544
    %v1547 = vmul.f32 %v1542, %v1545
    %1549 = vrot.lane.b32.xlu0 %v1547, 32
    %v1550 = vpop.permute.xlu0 %1549
    %v1552 = vadd.f32 %v1420, %v1550
    %v1553 = vtanh.pop %v1552
    %v1554 = vsub.f32 1.0, %v1542
    %1556 = vrot.lane.b32.xlu0 %v1553, 112
    %v1557 = vpop.permute.xlu0 %1556
    %v1559 = vmul.f32 %v1554, %v1557
    %v1560 = vmul.f32 %v1542, %v1497
    %v1561 = vadd.f32 %v1559, %v1560
    %1563 = vrot.lane.b32.xlu0 %v1561, 112
    %v1564 = vpop.permute.xlu0 %1563
    %v1565 = vsel %vm1435, %v1564, 0
    %1567 = vmatpush.msra.mxu0 0.0
    %1568 = vmatpush.msra.mxu0 0.0
    %1569 = vmatpush.msra.mxu0 0.0
    %1570 = vmatpush.msra.mxu0 0.0
    %1571 = vmatpush.msra.mxu0 0.0
    %1572 = vmatpush.msra.mxu0 0.0
    %1573 = vmatpush.msra.mxu0 0.0
    %1574 = vmatpush.msra.mxu0 0.0
    %1575 = vmatpush.msra.mxu0 0.0
    %1576 = vmatpush.msra.mxu0 0.0
    %1577 = vmatpush.msra.mxu0 0.0
    %1578 = vmatpush.msra.mxu0 0.0
    %1579 = vmatpush.msra.mxu0 0.0
    %1580 = vmatpush.msra.mxu0 0.0
    %1581 = vmatpush.msra.mxu0 %v1433
    %1582 = vmatpush.msra.mxu0 %v1432
    %1583 = vmatmul.f32.gmra.mxu0 %v1565
    %v1584 = vpop.f32.mrf.mxu0
    %v1585 = vadd.f32 %v1434, %v1584
    %1586 = vdwg.mxu0
    %v1587 = vadd.f32 %v1423, %v1585
    %v1588 = vxor.u32 %v1587, 2147483648
    %v1589 = vmul.f32 %v1588, 1.442695
    %v1590 = vpow.pop %v1589
    %v1591 = vadd.f32 %v1590, 1.0
    %v1592 = vrcp.pop %v1591
    %v1593 = vmul.f32 %v1591, %v1592
    %v1594 = vsub.f32 1.0, %v1593
    %v1595 = vmul.f32 %v1592, %v1594
    %v1596 = vadd.f32 %v1592, %v1595
    %vm1597 = vweird.f32 %v1591
    %vm1598 = vweird.f32 %v1592
    %vm1599 = vmor %vm1597, %vm1598
    %v1600 = vsel %vm1599, %v1592, %v1596
    %v1601 = vand.u32 2147483647, %v1591
    %vm1602 = vcmp.eq.f32.partialorder %v1601, 8.507059e+37
    %v1603 = vand.u32 %v1591, 2147483648
    %v1604 = vor.u32 1.1754944e-38, %v1603
    %v1605 = vsel %vm1602, %v1604, %v1600
    %v1606 = vmul.f32 1.0, %v1605
    %1608 = vrot.lane.b32.xlu0 %v1585, 96
    %v1609 = vpop.permute.xlu0 %1608
    %v1611 = vmul.f32 %v1606, %v1609
    %1613 = vrot.lane.b32.xlu0 %v1611, 32
    %v1614 = vpop.permute.xlu0 %1613
    %v1616 = vadd.f32 %v1423, %v1614
    %v1617 = vtanh.pop %v1616
    %v1618 = vsub.f32 1.0, %v1606
    %1620 = vrot.lane.b32.xlu0 %v1617, 112
    %v1621 = vpop.permute.xlu0 %1620
    %v1623 = vmul.f32 %v1618, %v1621
    %v1624 = vmul.f32 %v1606, %v1561
    %v1625 = vadd.f32 %v1623, %v1624
    %1627 = vrot.lane.b32.xlu0 %v1625, 112
    %v1628 = vpop.permute.xlu0 %1627
    %v1629 = vsel %vm1435, %v1628, 0
    %1631 = vmatpush.msra.mxu0 0.0
    %1632 = vmatpush.msra.mxu0 0.0
    %1633 = vmatpush.msra.mxu0 0.0
    %1634 = vmatpush.msra.mxu0 0.0
    %1635 = vmatpush.msra.mxu0 0.0
    %1636 = vmatpush.msra.mxu0 0.0
    %1637 = vmatpush.msra.mxu0 0.0
    %1638 = vmatpush.msra.mxu0 0.0
    %1639 = vmatpush.msra.mxu0 0.0
    %1640 = vmatpush.msra.mxu0 0.0
    %1641 = vmatpush.msra.mxu0 0.0
    %1642 = vmatpush.msra.mxu0 0.0
    %1643 = vmatpush.msra.mxu0 0.0
    %1644 = vmatpush.msra.mxu0 0.0
    %1645 = vmatpush.msra.mxu0 %v1433
    %1646 = vmatpush.msra.mxu0 %v1432
    %1647 = vmatmul.f32.gmra.mxu0 %v1629
    %v1648 = vpop.f32.mrf.mxu0
    %v1649 = vadd.f32 %v1434, %v1648
    %1650 = vdwg.mxu0
    %v1651 = vadd.f32 %v1426, %v1649
    %v1652 = vxor.u32 %v1651, 2147483648
    %v1653 = vmul.f32 %v1652, 1.442695
    %v1654 = vpow.pop %v1653
    %v1655 = vadd.f32 %v1654, 1.0
    %v1656 = vrcp.pop %v1655
    %v1657 = vmul.f32 %v1655, %v1656
    %v1658 = vsub.f32 1.0, %v1657
    %v1659 = vmul.f32 %v1656, %v1658
    %v1660 = vadd.f32 %v1656, %v1659
    %vm1661 = vweird.f32 %v1655
    %vm1662 = vweird.f32 %v1656
    %vm1663 = vmor %vm1661, %vm1662
    %v1664 = vsel %vm1663, %v1656, %v1660
    %v1665 = vand.u32 2147483647, %v1655
    %vm1666 = vcmp.eq.f32.partialorder %v1665, 8.507059e+37
    %v1667 = vand.u32 %v1655, 2147483648
    %v1668 = vor.u32 1.1754944e-38, %v1667
    %v1669 = vsel %vm1666, %v1668, %v1664
    %v1670 = vmul.f32 1.0, %v1669
    %1672 = vrot.lane.b32.xlu0 %v1649, 96
    %v1673 = vpop.permute.xlu0 %1672
    %v1675 = vmul.f32 %v1670, %v1673
    %1677 = vrot.lane.b32.xlu0 %v1675, 32
    %v1678 = vpop.permute.xlu0 %1677
    %v1680 = vadd.f32 %v1426, %v1678
    %v1681 = vtanh.pop %v1680
    %v1682 = vsub.f32 1.0, %v1670
    %1684 = vrot.lane.b32.xlu0 %v1681, 112
    %v1685 = vpop.permute.xlu0 %1684
    %v1687 = vmul.f32 %v1682, %v1685
    %v1688 = vmul.f32 %v1670, %v1625
    %v1689 = vadd.f32 %v1687, %v1688
    %1691 = vrot.lane.b32.xlu0 %v1689, 112
    %v1692 = vpop.permute.xlu0 %1691
    %v1693 = vsel %vm1435, %v1692, 0
    %1695 = vmatpush.msra.mxu0 0.0
    %1696 = vmatpush.msra.mxu0 0.0
    %1697 = vmatpush.msra.mxu0 0.0
    %1698 = vmatpush.msra.mxu0 0.0
    %1699 = vmatpush.msra.mxu0 0.0
    %1700 = vmatpush.msra.mxu0 0.0
    %1701 = vmatpush.msra.mxu0 0.0
    %1702 = vmatpush.msra.mxu0 0.0
    %1703 = vmatpush.msra.mxu0 0.0
    %1704 = vmatpush.msra.mxu0 0.0
    %1705 = vmatpush.msra.mxu0 0.0
    %1706 = vmatpush.msra.mxu0 0.0
    %1707 = vmatpush.msra.mxu0 0.0
    %1708 = vmatpush.msra.mxu0 0.0
    %1709 = vmatpush.msra.mxu0 %v1433
    %1710 = vmatpush.msra.mxu0 %v1432
    %1711 = vmatmul.f32.gmra.mxu0 %v1693
    %v1712 = vpop.f32.mrf.mxu0
    %v1713 = vadd.f32 %v1434, %v1712
    %1714 = vdwg.mxu0
    %v1715 = vadd.f32 %v1429, %v1713
    %v1716 = vxor.u32 %v1715, 2147483648
    %v1717 = vmul.f32 %v1716, 1.442695
    %v1718 = vpow.pop %v1717
    %v1719 = vadd.f32 %v1718, 1.0
    %v1720 = vrcp.pop %v1719
    %v1721 = vmul.f32 %v1719, %v1720
    %v1722 = vsub.f32 1.0, %v1721
    %v1723 = vmul.f32 %v1720, %v1722
    %v1724 = vadd.f32 %v1720, %v1723
    %vm1725 = vweird.f32 %v1719
    %vm1726 = vweird.f32 %v1720
    %vm1727 = vmor %vm1725, %vm1726
    %v1728 = vsel %vm1727, %v1720, %v1724
    %v1729 = vand.u32 2147483647, %v1719
    %vm1730 = vcmp.eq.f32.partialorder %v1729, 8.507059e+37
    %v1731 = vand.u32 %v1719, 2147483648
    %v1732 = vor.u32 1.1754944e-38, %v1731
    %v1733 = vsel %vm1730, %v1732, %v1728
    %v1734 = vmul.f32 1.0, %v1733
    %1736 = vrot.lane.b32.xlu0 %v1713, 96
    %v1737 = vpop.permute.xlu0 %1736
    %v1739 = vmul.f32 %v1734, %v1737
    %1741 = vrot.lane.b32.xlu0 %v1739, 32
    %v1742 = vpop.permute.xlu0 %1741
    %v1744 = vadd.f32 %v1429, %v1742
    %v1745 = vtanh.pop %v1744
    %v1746 = vsub.f32 1.0, %v1734
    %1748 = vrot.lane.b32.xlu0 %v1745, 112
    %v1749 = vpop.permute.xlu0 %1748
    %v1751 = vmul.f32 %v1746, %v1749
    %v1752 = vmul.f32 %v1734, %v1689
    %v1753 = vadd.f32 %v1751, %v1752
    %v1754 = vld [vmem:[%s4 + $0x2] sm:$0x1]
    %v1755 = vperm.slane %v1754, 0
    %1757 = vrot.lane.b32.xlu0 %v1755, 16
    %v1758 = vpop.permute.xlu0 %1757
    %v1760 = vmul.f32 %v1753, %v1758
    %v1761 = vld [vmem:[%s4 + $0x3] sm:$0x1]
    %v1762 = vperm.slane %v1761, 0
    %1764 = vrot.lane.b32.xlu0 %v1762, 16
    %v1765 = vpop.permute.xlu0 %1764
    %v1767 = vadd.f32 %v1760, %v1765
    %s1768 = sld [smem:[#allocation2 + $0x2]]
    %vm1769 = vcmp.ge.f32.partialorder %v1767, 0.0
    %v1770 = vstv %s1768
    %v1771 = vmul.f32 %v1770, %v1767
    %v1772 = vsel %vm1769, %v1767, %v1771
    %v1773 = vld [vmem:[%s10] sm:$0xff]
    %v1774 = vld [vmem:[%s10 + $0x8] sm:$0xff]
    %v1775 = vld [vmem:[%s4 + $0x4] sm:$0x1]
    %v1776 = vperm.slane %v1775, 0
    %1778 = vrot.lane.b32.xlu0 %v1772, 112
    %v1779 = vpop.permute.xlu0 %1778
    %v1780 = vsel %vm1435, %v1779, 0
    %1782 = vmatpush.msra.mxu0 0.0
    %1783 = vmatpush.msra.mxu0 0.0
    %1784 = vmatpush.msra.mxu0 0.0
    %1785 = vmatpush.msra.mxu0 0.0
    %1786 = vmatpush.msra.mxu0 0.0
    %1787 = vmatpush.msra.mxu0 0.0
    %1788 = vmatpush.msra.mxu0 0.0
    %1789 = vmatpush.msra.mxu0 0.0
    %1790 = vmatpush.msra.mxu0 0.0
    %1791 = vmatpush.msra.mxu0 0.0
    %1792 = vmatpush.msra.mxu0 0.0
    %1793 = vmatpush.msra.mxu0 0.0
    %1794 = vmatpush.msra.mxu0 0.0
    %1795 = vmatpush.msra.mxu0 0.0
    %1796 = vmatpush.msra.mxu0 %v1774
    %1797 = vmatpush.msra.mxu0 %v1773
    %1798 = vmatmul.f32.gmra.mxu0 %v1780
    %v1799 = vpop.f32.mrf.mxu0
    %v1800 = vadd.f32 %v1776, %v1799
    %1801 = vdwg.mxu0
    %s1802 = sld [smem:[#allocation2 + $0x3]]
    %vm1803 = vcmp.ge.f32.partialorder %v1800, 0.0
    %v1804 = vstv %s1802
    %v1805 = vmul.f32 %v1804, %v1800
    %v1806 = vsel %vm1803, %v1800, %v1805
    %v1807 = vld [vmem:[%s2] sm:$0xff]
    %v1808 = vld [vmem:[%s11] sm:$0xff]
    %v1809 = vld [vmem:[%s4 + $0x5] sm:$0x1]
    %v1810 = vperm.slane %v1809, 0
    %v1812 = vsel %vm1383, %v1807, 0
    %1814 = vmatpush.msra.mxu0 0.0
    %1815 = vmatpush.msra.mxu0 0.0
    %1816 = vmatpush.msra.mxu0 0.0
    %1817 = vmatpush.msra.mxu0 0.0
    %1818 = vmatpush.msra.mxu0 0.0
    %1819 = vmatpush.msra.mxu0 0.0
    %1820 = vmatpush.msra.mxu0 0.0
    %1821 = vmatpush.msra.mxu0 0.0
    %1822 = vmatpush.msra.mxu0 0.0
    %1823 = vmatpush.msra.mxu0 0.0
    %1824 = vmatpush.msra.mxu0 0.0
    %1825 = vmatpush.msra.mxu0 0.0
    %1826 = vmatpush.msra.mxu0 0.0
    %1827 = vmatpush.msra.mxu0 0.0
    %1828 = vmatpush.msra.mxu0 0.0
    %1829 = vmatpush.msra.mxu0 %v1808
    %1830 = vmatmul.f32.gmra.mxu0 %v1812
    %v1831 = vpop.f32.mrf.mxu0
    %v1832 = vadd.f32 %v1810, %v1831
    %1833 = vdwg.mxu0
    %s1834 = sld [smem:[#allocation2 + $0x4]]
    %vm1835 = vcmp.ge.f32.partialorder %v1832, 0.0
    %v1836 = vstv %s1834
    %v1837 = vmul.f32 %v1836, %v1832
    %v1838 = vsel %vm1835, %v1832, %v1837
    %1839 = vst.msk [vmem:[%s12] sm:$0xff] %vm1435, %v1376
    %1841 = vrot.lane.b32.xlu0 %v1806, 16
    %v1842 = vpop.permute.xlu0 %1841
    %vm1844 = vcmask 261248
    %1845 = vst.msk [vmem:[%s12] sm:$0xff] %vm1844, %v1842
    %1847 = vrot.lane.b32.xlu0 %v1838, 32
    %v1848 = vpop.permute.xlu0 %1847
    %vm1850 = vcmask 326912
    %1851 = vst.msk [vmem:[%s12] sm:$0xff] %vm1850, %v1848
    // Predicated region
    $region54: #{obs_in_forward.1} parent=1 // pred_check
      _
    $region55: #{obs_in_forward.1} parent=1 // pred_check_branch
      %1853 = sbr.rel (0) target = $region57
    $region56: #{obs_in_forward.1} parent=1 // pred_region
      _
    $region57: #{obs_in_forward.1} parent=1 // pred_fallthru
      _
    // Predicated region
    $region58: #{obs_in_forward.1} parent=1 // pred_check
      _
    $region59: #{obs_in_forward.1} parent=1 // pred_check_branch
      %1855 = sbr.rel (0) target = $region61
    $region60: #{obs_in_forward.1} parent=1 // pred_region
      _
    $region61: #{obs_in_forward.1} parent=1 // pred_fallthru
      _
    %1856 = vsyncpa [#allocation3], 1

</llo_original>
